<compile_context>
chip_gen: v6e
topology: v6e:2x2x1
jax: 0.10.0
libtpu: 0.0.40
codegen_flags: <defaults>
</compile_context>

<pallas_src>
import functools

import jax
import jax.numpy as jnp
from jax.experimental import pallas as pl
from jax.experimental.pallas import tpu as pltpu

LANE = 128


def _round_up(x, m):
    return ((x + m - 1) // m) * m


def _choose_tm(m):
    # M-tile: multiple of 16 (bf16 sublane packing), capped at 256 rows.
    return min(256, _round_up(m, 16))


# ---------------------------------------------------------------------------
# Pallas kernels
# ---------------------------------------------------------------------------
def _linear_kernel(x_ref, w_ref, b_ref, o_ref, *, relu):
    # x: (TM, K) bf16, w: (K, N) bf16, b: (1, N) f32, o: (TM, N)
    acc = jnp.dot(x_ref[...], w_ref[...], preferred_element_type=jnp.float32)
    acc = acc + b_ref[...]
    if relu:
        acc = jnp.maximum(acc, 0.0)
    o_ref[...] = acc.astype(o_ref.dtype)


def _dueling_head_kernel(x_ref, w1_ref, b1_ref, w2_ref, b2_ref, o_ref, *,
                         n_actions):
    # Fused: h = relu(x@W1+b1); z = h@W2+b2; out = s + q - mean(q)
    #   z columns [0, n_actions)  = q (advantage branch)
    #   z column  n_actions       = s (state-value branch)
    #   remaining columns         = zero padding (sliced off in wrapper)
    h = jnp.dot(x_ref[...], w1_ref[...], preferred_element_type=jnp.float32)
    h = jnp.maximum(h + b1_ref[...], 0.0)
    z = jnp.dot(h.astype(w2_ref.dtype), w2_ref[...],
                preferred_element_type=jnp.float32)
    z = z + b2_ref[...]
    lane = jax.lax.broadcasted_iota(jnp.int32, z.shape, 1)
    q_mask = (lane < n_actions).astype(jnp.float32)
    s_mask = (lane == n_actions).astype(jnp.float32)
    q_mean = jnp.sum(z * q_mask, axis=1, keepdims=True) * (1.0 / n_actions)
    s_val = jnp.sum(z * s_mask, axis=1, keepdims=True)
    o_ref[...] = s_val + z - q_mean


# ---------------------------------------------------------------------------
# Pallas wrappers
# ---------------------------------------------------------------------------
def fused_linear(x, w_bf16, b_row, *, relu, out_dtype=jnp.float32):
    """y = [relu](x @ w + b); tiled over M, N pre-padded to a multiple of 128."""
    M, K = x.shape
    Kw, N = w_bf16.shape
    assert K == Kw and N % LANE == 0
    tm = _choose_tm(M)
    mp = _round_up(M, tm)
    xb = x.astype(jnp.bfloat16)
    if mp != M:
        xb = jnp.pad(xb, ((0, mp - M), (0, 0)))
    cost = pl.CostEstimate(
        flops=2 * mp * K * N,
        transcendentals=0,
        bytes_accessed=mp * K * 2 + K * N * 2 + N * 4
        + mp * N * jnp.dtype(out_dtype).itemsize)
    out = pl.pallas_call(
        functools.partial(_linear_kernel, relu=relu),
        out_shape=jax.ShapeDtypeStruct((mp, N), out_dtype),
        grid=(mp // tm,),
        in_specs=[
            pl.BlockSpec((tm, K), lambda i: (i, 0)),
            pl.BlockSpec((K, N), lambda i: (0, 0)),
            pl.BlockSpec((1, N), lambda i: (0, 0)),
        ],
        out_specs=pl.BlockSpec((tm, N), lambda i: (i, 0)),
        compiler_params=pltpu.CompilerParams(
            dimension_semantics=("parallel",)),
        cost_estimate=cost,
    )(xb, w_bf16, b_row)
    return out[:M]


def dueling_head(latent, w1, b1, w2, b2, n_actions):
    """Fused q/state branches + dueling combine in one kernel."""
    M, K = latent.shape
    n1 = w1.shape[1]           # 512 (256 q-hidden | 256 s-hidden)
    np2 = w2.shape[1]          # out_dim + 1, padded to 128
    tm = _choose_tm(M)
    mp = _round_up(M, tm)
    xb = latent.astype(jnp.bfloat16)
    if mp != M:
        xb = jnp.pad(xb, ((0, mp - M), (0, 0)))
    cost = pl.CostEstimate(
        flops=2 * mp * K * n1 + 2 * mp * n1 * np2,
        transcendentals=0,
        bytes_accessed=mp * K * 2 + K * n1 * 2 + n1 * np2 * 2
        + n1 * 4 + np2 * 4 + mp * np2 * 4)
    out = pl.pallas_call(
        functools.partial(_dueling_head_kernel, n_actions=n_actions),
        out_shape=jax.ShapeDtypeStruct((mp, np2), jnp.float32),
        grid=(mp // tm,),
        in_specs=[
            pl.BlockSpec((tm, K), lambda i: (i, 0)),
            pl.BlockSpec((K, n1), lambda i: (0, 0)),
            pl.BlockSpec((1, n1), lambda i: (0, 0)),
            pl.BlockSpec((n1, np2), lambda i: (0, 0)),
            pl.BlockSpec((1, np2), lambda i: (0, 0)),
        ],
        out_specs=pl.BlockSpec((tm, np2), lambda i: (i, 0)),
        compiler_params=pltpu.CompilerParams(
            dimension_semantics=("parallel",)),
        cost_estimate=cost,
    )(xb, w1, b1, w2, b2)
    return out[:M, :n_actions]


# ---------------------------------------------------------------------------
# Conv = im2col (glue) + Pallas fused matmul+bias+ReLU
# ---------------------------------------------------------------------------
def conv2d_relu(x_nhwc, w_flat, b_row, cout, kh, kw, stride):
    n, hh, ww, c = x_nhwc.shape
    oh = (hh - kh) // stride + 1
    ow = (ww - kw) // stride + 1
    # TODO(synk): im2col still materializes patches XLA-side; an in-kernel
    # strided-DMA gather (memory_space=pl.ANY) would cut the 4-9x HBM expansion.
    cols = []
    for ky in range(kh):
        for kx in range(kw):
            cols.append(x_nhwc[:, ky:ky + oh * stride:stride,
                               kx:kx + ow * stride:stride, :])
    # column order (ky, kx, ci) matches w_flat row order.
    patches = jnp.concatenate(cols, axis=-1).reshape(n * oh * ow, kh * kw * c)
    y = fused_linear(patches, w_flat, b_row, relu=True, out_dtype=jnp.bfloat16)
    return y[:, :cout].reshape(n, oh, ow, cout)


# ---------------------------------------------------------------------------
# Parameter init (xavier_uniform gain=1, zero bias) in PyTorch layouts
# ---------------------------------------------------------------------------
def _xavier_uniform(key, shape, fan_in, fan_out):
    bound = (6.0 / (fan_in + fan_out)) ** 0.5
    return jax.random.uniform(key, shape, jnp.float32, -bound, bound)


def init_params(key, in_shape, out_dim):
    c, h, w = in_shape
    cnn_out_dim = 64 * ((h - 28) // 8) * ((w - 28) // 8)
    keys = jax.random.split(key, 7)
    p = {}
    p["c1_w"] = _xavier_uniform(keys[0], (32, c, 8, 8), c * 8 * 8, 32 * 8 * 8)
    p["c1_b"] = jnp.zeros((32,), jnp.float32)
    p["c2_w"] = _xavier_uniform(keys[1], (64, 32, 4, 4), 32 * 4 * 4, 64 * 4 * 4)
    p["c2_b"] = jnp.zeros((64,), jnp.float32)
    p["c3_w"] = _xavier_uniform(keys[2], (64, 64, 3, 3), 64 * 3 * 3, 64 * 3 * 3)
    p["c3_b"] = jnp.zeros((64,), jnp.float32)
    p["q1_w"] = _xavier_uniform(keys[3], (cnn_out_dim, 256), cnn_out_dim, 256)
    p["q1_b"] = jnp.zeros((256,), jnp.float32)
    p["q2_w"] = _xavier_uniform(keys[4], (256, out_dim), 256, out_dim)
    p["q2_b"] = jnp.zeros((out_dim,), jnp.float32)
    p["s1_w"] = _xavier_uniform(keys[5], (cnn_out_dim, 256), cnn_out_dim, 256)
    p["s1_b"] = jnp.zeros((256,), jnp.float32)
    p["s2_w"] = _xavier_uniform(keys[6], (256, 1), 256, 1)
    p["s2_b"] = jnp.zeros((1,), jnp.float32)
    return p


# ---------------------------------------------------------------------------
# One-time weight preparation (runs once, outside the jitted forward):
#   * conv weights flattened to (KH*KW*Cin, Cout) and lane-padded to 128
#   * head layer-1 weights concatenated [q1|s1] and row-permuted to NHWC
#     flatten order (so no runtime transpose of the latent is needed)
#   * head layer-2 weights packed block-diagonally into (512, 128)
#   * all matmul weights cast to bf16; biases kept f32 as (1, N) rows
# ---------------------------------------------------------------------------
def prepare_params(params, in_shape, out_dim):
    c, h, w = in_shape
    oh1, ow1 = (h - 8) // 4 + 1, (w - 8) // 4 + 1
    oh2, ow2 = (oh1 - 4) // 2 + 1, (ow1 - 4) // 2 + 1
    oh3, ow3 = oh2 - 2, ow2 - 2

    def conv_pack(w_oihw, b):
        o, i, kh, kw = w_oihw.shape
        wf = jnp.transpose(w_oihw, (2, 3, 1, 0)).reshape(kh * kw * i, o)
        n_pad = _round_up(o, LANE)
        wf = jnp.pad(wf, ((0, 0), (0, n_pad - o))).astype(jnp.bfloat16)
        bf = jnp.pad(b, (0, n_pad - o)).reshape(1, n_pad).astype(jnp.float32)
        return wf, bf

    fp = {}
    fp["c1_w"], fp["c1_b"] = conv_pack(params["c1_w"], params["c1_b"])
    fp["c2_w"], fp["c2_b"] = conv_pack(params["c2_w"], params["c2_b"])
    fp["c3_w"], fp["c3_b"] = conv_pack(params["c3_w"], params["c3_b"])

    # head layer 1: [q1 | s1] with rows permuted NCHW-flatten -> NHWC-flatten
    w1 = jnp.concatenate([params["q1_w"], params["s1_w"]], axis=1)  # (D, 512)
    d, n1 = w1.shape
    w1 = w1.reshape(64, oh3, ow3, n1).transpose(1, 2, 0, 3).reshape(d, n1)
    fp["h1_w"] = w1.astype(jnp.bfloat16)
    fp["h1_b"] = jnp.concatenate(
        [params["q1_b"], params["s1_b"]]).reshape(1, n1).astype(jnp.float32)

    # head layer 2: block-diagonal [q2 ; s2] -> (512, out_dim+1) padded to 128
    np2 = _round_up(out_dim + 1, LANE)
    w2 = jnp.zeros((n1, np2), jnp.float32)
    w2 = w2.at[:256, :out_dim].set(params["q2_w"])
    w2 = w2.at[256:, out_dim].set(params["s2_w"][:, 0])
    fp["h2_w"] = w2.astype(jnp.bfloat16)
    b2 = jnp.zeros((1, np2), jnp.float32)
    b2 = b2.at[0, :out_dim].set(params["q2_b"])
    b2 = b2.at[0, out_dim].set(params["s2_b"][0])
    fp["h2_b"] = b2
    return fp


# ---------------------------------------------------------------------------
# Forward pass (matches CNN.forward with dueling=True)
# ---------------------------------------------------------------------------
def cnn_forward(fparams, x_nchw, n_actions):
    # NCHW -> NHWC; bf16 activations (MXU inputs), f32 accumulation in-kernel.
    x = jnp.transpose(x_nchw, (0, 2, 3, 1)).astype(jnp.bfloat16)
    x = conv2d_relu(x, fparams["c1_w"], fparams["c1_b"], 32, 8, 8, 4)
    x = conv2d_relu(x, fparams["c2_w"], fparams["c2_b"], 64, 4, 4, 2)
    x = conv2d_relu(x, fparams["c3_w"], fparams["c3_b"], 64, 3, 3, 1)
    # NHWC flatten; head layer-1 weights were row-permuted to match, so no
    # runtime transpose of the latent is needed.
    latent = x.reshape(x.shape[0], -1)
    return dueling_head(latent, fparams["h1_w"], fparams["h1_b"],
                        fparams["h2_w"], fparams["h2_b"], n_actions)


if __name__ == "__main__":
    key = jax.random.PRNGKey(0)
    # h = w = 36 -> cnn_out_dim = 64 * ((36-28)//8)^2 = 64
    in_shape = (4, 36, 36)
    out_dim = 6
    batch = 2

    params = init_params(key, in_shape, out_dim)
    fparams = prepare_params(params, in_shape, out_dim)
    x = jax.random.normal(jax.random.fold_in(key, 123),
                          (batch,) + in_shape, jnp.float32)

    fwd = jax.jit(functools.partial(cnn_forward, n_actions=out_dim))
    out = jax.block_until_ready(fwd(fparams, x))

    assert out.shape == (batch, out_dim), out.shape
    assert out.dtype == jnp.float32
    print("KERNEL_OK")
</pallas_src>

<mosaic_0001>
module attributes {stable_mosaic.version = 11 : i64} {
  func.func @_linear_kernel(%arg0: i32, %arg1: memref<128x256xbf16, #tpu.memory_space<vmem>>, %arg2: memref<256x128xbf16, #tpu.memory_space<vmem>>, %arg3: memref<1x128xf32, #tpu.memory_space<vmem>>, %arg4: memref<128x128xbf16, #tpu.memory_space<vmem>>) attributes {dimension_semantics = [#tpu.dimension_semantics<parallel>], iteration_bounds = array<i64: 1>, scalar_prefetch = 0 : i64, scratch_operands = 0 : i64, tpu.core_type = #tpu.core_type<tc>, window_params = [{transform_indices = @transform_0, window_bounds = array<i64: 128, 256>}, {pipeline_mode = #tpu.pipeline_mode<synchronous>, transform_indices = @transform_1, window_bounds = array<i64: 256, 128>}, {pipeline_mode = #tpu.pipeline_mode<synchronous>, transform_indices = @transform_2, window_bounds = array<i64: 1, 128>}, {transform_indices = @transform_3, window_bounds = array<i64: 128, 128>}]} {
    %c0 = arith.constant 0 : index
    %c0_0 = arith.constant 0 : index
    %0 = vector.load %arg1[%c0, %c0_0] : memref<128x256xbf16, #tpu.memory_space<vmem>>, vector<128x256xbf16>
    %c0_1 = arith.constant 0 : index
    %c0_2 = arith.constant 0 : index
    %1 = vector.load %arg2[%c0_1, %c0_2] : memref<256x128xbf16, #tpu.memory_space<vmem>>, vector<256x128xbf16>
    %cst = arith.constant dense<0.000000e+00> : vector<128x128xf32>
    %2 = tpu.matmul %0, %1, %cst {dimension_numbers = #tpu.dot_dimension_numbers<[1], [0], [0], [1], [0, 0, 1, 1], [], []>} : vector<128x256xbf16>, vector<256x128xbf16>, vector<128x128xf32> -> vector<128x128xf32>
    %c0_3 = arith.constant 0 : index
    %c0_4 = arith.constant 0 : index
    %3 = vector.load %arg3[%c0_3, %c0_4] : memref<1x128xf32, #tpu.memory_space<vmem>>, vector<1x128xf32>
    %4 = vector.broadcast %3 : vector<1x128xf32> to vector<128x128xf32>
    %5 = arith.addf %2, %4 : vector<128x128xf32>
    %cst_5 = arith.constant 0.000000e+00 : f32
    %6 = vector.broadcast %cst_5 : f32 to vector<128x128xf32>
    %7 = arith.maximumf %5, %6 : vector<128x128xf32>
    %8 = arith.truncf %7 : vector<128x128xf32> to vector<128x128xbf16>
    %c0_6 = arith.constant 0 : index
    %c0_7 = arith.constant 0 : index
    %9 = vector.load %arg4[%c0_6, %c0_7] : memref<128x128xbf16, #tpu.memory_space<vmem>>, vector<128x128xbf16>
    tpu.vector_store %arg4[%c0_6, %c0_7], %8 {strides = array<i32>} : memref<128x128xbf16, #tpu.memory_space<vmem>>, vector<128x128xbf16>,
    return
  }
  func.func @transform_0(%arg0: i32) -> (i32, i32) {
    %c0_i32 = arith.constant 0 : i32
    %c0_i32_0 = arith.constant 0 : i32
    return %arg0, %c0_i32 : i32, i32
  }
  func.func @transform_1(%arg0: i32) -> (i32, i32) {
    %c0_i32 = arith.constant 0 : i32
    %c0_i32_0 = arith.constant 0 : i32
    %c0_i32_1 = arith.constant 0 : i32
    return %c0_i32, %c0_i32_0 : i32, i32
  }
  func.func @transform_2(%arg0: i32) -> (i32, i32) {
    %c0_i32 = arith.constant 0 : i32
    %c0_i32_0 = arith.constant 0 : i32
    %c0_i32_1 = arith.constant 0 : i32
    return %c0_i32, %c0_i32_0 : i32, i32
  }
  func.func @transform_3(%arg0: i32) -> (i32, i32) {
    %c0_i32 = arith.constant 0 : i32
    %c0_i32_0 = arith.constant 0 : i32
    return %arg0, %c0_i32 : i32, i32
  }
}

module attributes {stable_mosaic.version = 11 : i64} {
  func.func @_linear_kernel(%arg0: i32, %arg1: memref<32x512xbf16, #tpu.memory_space<vmem>>, %arg2: memref<512x128xbf16, #tpu.memory_space<vmem>>, %arg3: memref<1x128xf32, #tpu.memory_space<vmem>>, %arg4: memref<32x128xbf16, #tpu.memory_space<vmem>>) attributes {dimension_semantics = [#tpu.dimension_semantics<parallel>], iteration_bounds = array<i64: 1>, scalar_prefetch = 0 : i64, scratch_operands = 0 : i64, tpu.core_type = #tpu.core_type<tc>, window_params = [{transform_indices = @transform_0, window_bounds = array<i64: 32, 512>}, {pipeline_mode = #tpu.pipeline_mode<synchronous>, transform_indices = @transform_1, window_bounds = array<i64: 512, 128>}, {pipeline_mode = #tpu.pipeline_mode<synchronous>, transform_indices = @transform_2, window_bounds = array<i64: 1, 128>}, {transform_indices = @transform_3, window_bounds = array<i64: 32, 128>}]} {
    %c0 = arith.constant 0 : index
    %c0_0 = arith.constant 0 : index
    %0 = vector.load %arg1[%c0, %c0_0] : memref<32x512xbf16, #tpu.memory_space<vmem>>, vector<32x512xbf16>
    %c0_1 = arith.constant 0 : index
    %c0_2 = arith.constant 0 : index
    %1 = vector.load %arg2[%c0_1, %c0_2] : memref<512x128xbf16, #tpu.memory_space<vmem>>, vector<512x128xbf16>
    %cst = arith.constant dense<0.000000e+00> : vector<32x128xf32>
    %2 = tpu.matmul %0, %1, %cst {dimension_numbers = #tpu.dot_dimension_numbers<[1], [0], [0], [1], [0, 0, 1, 1], [], []>} : vector<32x512xbf16>, vector<512x128xbf16>, vector<32x128xf32> -> vector<32x128xf32>
    %c0_3 = arith.constant 0 : index
    %c0_4 = arith.constant 0 : index
    %3 = vector.load %arg3[%c0_3, %c0_4] : memref<1x128xf32, #tpu.memory_space<vmem>>, vector<1x128xf32>
    %4 = vector.broadcast %3 : vector<1x128xf32> to vector<32x128xf32>
    %5 = arith.addf %2, %4 : vector<32x128xf32>
    %cst_5 = arith.constant 0.000000e+00 : f32
    %6 = vector.broadcast %cst_5 : f32 to vector<32x128xf32>
    %7 = arith.maximumf %5, %6 : vector<32x128xf32>
    %8 = arith.truncf %7 : vector<32x128xf32> to vector<32x128xbf16>
    %c0_6 = arith.constant 0 : index
    %c0_7 = arith.constant 0 : index
    %9 = vector.load %arg4[%c0_6, %c0_7] : memref<32x128xbf16, #tpu.memory_space<vmem>>, vector<32x128xbf16>
    tpu.vector_store %arg4[%c0_6, %c0_7], %8 {strides = array<i32>} : memref<32x128xbf16, #tpu.memory_space<vmem>>, vector<32x128xbf16>,
    return
  }
  func.func @transform_0(%arg0: i32) -> (i32, i32) {
    %c0_i32 = arith.constant 0 : i32
    %c0_i32_0 = arith.constant 0 : i32
    return %arg0, %c0_i32 : i32, i32
  }
  func.func @transform_1(%arg0: i32) -> (i32, i32) {
    %c0_i32 = arith.constant 0 : i32
    %c0_i32_0 = arith.constant 0 : i32
    %c0_i32_1 = arith.constant 0 : i32
    return %c0_i32, %c0_i32_0 : i32, i32
  }
  func.func @transform_2(%arg0: i32) -> (i32, i32) {
    %c0_i32 = arith.constant 0 : i32
    %c0_i32_0 = arith.constant 0 : i32
    %c0_i32_1 = arith.constant 0 : i32
    return %c0_i32, %c0_i32_0 : i32, i32
  }
  func.func @transform_3(%arg0: i32) -> (i32, i32) {
    %c0_i32 = arith.constant 0 : i32
    %c0_i32_0 = arith.constant 0 : i32
    return %arg0, %c0_i32 : i32, i32
  }
}

module attributes {stable_mosaic.version = 11 : i64} {
  func.func @_linear_kernel(%arg0: i32, %arg1: memref<16x576xbf16, #tpu.memory_space<vmem>>, %arg2: memref<576x128xbf16, #tpu.memory_space<vmem>>, %arg3: memref<1x128xf32, #tpu.memory_space<vmem>>, %arg4: memref<16x128xbf16, #tpu.memory_space<vmem>>) attributes {dimension_semantics = [#tpu.dimension_semantics<parallel>], iteration_bounds = array<i64: 1>, scalar_prefetch = 0 : i64, scratch_operands = 0 : i64, tpu.core_type = #tpu.core_type<tc>, window_params = [{transform_indices = @transform_0, window_bounds = array<i64: 16, 576>}, {pipeline_mode = #tpu.pipeline_mode<synchronous>, transform_indices = @transform_1, window_bounds = array<i64: 576, 128>}, {pipeline_mode = #tpu.pipeline_mode<synchronous>, transform_indices = @transform_2, window_bounds = array<i64: 1, 128>}, {transform_indices = @transform_3, window_bounds = array<i64: 16, 128>}]} {
    %c0 = arith.constant 0 : index
    %c0_0 = arith.constant 0 : index
    %0 = vector.load %arg1[%c0, %c0_0] : memref<16x576xbf16, #tpu.memory_space<vmem>>, vector<16x576xbf16>
    %c0_1 = arith.constant 0 : index
    %c0_2 = arith.constant 0 : index
    %1 = vector.load %arg2[%c0_1, %c0_2] : memref<576x128xbf16, #tpu.memory_space<vmem>>, vector<576x128xbf16>
    %cst = arith.constant dense<0.000000e+00> : vector<16x128xf32>
    %2 = tpu.matmul %0, %1, %cst {dimension_numbers = #tpu.dot_dimension_numbers<[1], [0], [0], [1], [0, 0, 1, 1], [], []>} : vector<16x576xbf16>, vector<576x128xbf16>, vector<16x128xf32> -> vector<16x128xf32>
    %c0_3 = arith.constant 0 : index
    %c0_4 = arith.constant 0 : index
    %3 = vector.load %arg3[%c0_3, %c0_4] : memref<1x128xf32, #tpu.memory_space<vmem>>, vector<1x128xf32>
    %4 = vector.broadcast %3 : vector<1x128xf32> to vector<16x128xf32>
    %5 = arith.addf %2, %4 : vector<16x128xf32>
    %cst_5 = arith.constant 0.000000e+00 : f32
    %6 = vector.broadcast %cst_5 : f32 to vector<16x128xf32>
    %7 = arith.maximumf %5, %6 : vector<16x128xf32>
    %8 = arith.truncf %7 : vector<16x128xf32> to vector<16x128xbf16>
    %c0_6 = arith.constant 0 : index
    %c0_7 = arith.constant 0 : index
    %9 = vector.load %arg4[%c0_6, %c0_7] : memref<16x128xbf16, #tpu.memory_space<vmem>>, vector<16x128xbf16>
    tpu.vector_store %arg4[%c0_6, %c0_7], %8 {strides = array<i32>} : memref<16x128xbf16, #tpu.memory_space<vmem>>, vector<16x128xbf16>,
    return
  }
  func.func @transform_0(%arg0: i32) -> (i32, i32) {
    %c0_i32 = arith.constant 0 : i32
    %c0_i32_0 = arith.constant 0 : i32
    return %arg0, %c0_i32 : i32, i32
  }
  func.func @transform_1(%arg0: i32) -> (i32, i32) {
    %c0_i32 = arith.constant 0 : i32
    %c0_i32_0 = arith.constant 0 : i32
    %c0_i32_1 = arith.constant 0 : i32
    return %c0_i32, %c0_i32_0 : i32, i32
  }
  func.func @transform_2(%arg0: i32) -> (i32, i32) {
    %c0_i32 = arith.constant 0 : i32
    %c0_i32_0 = arith.constant 0 : i32
    %c0_i32_1 = arith.constant 0 : i32
    return %c0_i32, %c0_i32_0 : i32, i32
  }
  func.func @transform_3(%arg0: i32) -> (i32, i32) {
    %c0_i32 = arith.constant 0 : i32
    %c0_i32_0 = arith.constant 0 : i32
    return %arg0, %c0_i32 : i32, i32
  }
}

module attributes {stable_mosaic.version = 11 : i64} {
  func.func @_dueling_head_kernel(%arg0: i32, %arg1: memref<16x64xbf16, #tpu.memory_space<vmem>>, %arg2: memref<64x512xbf16, #tpu.memory_space<vmem>>, %arg3: memref<1x512xf32, #tpu.memory_space<vmem>>, %arg4: memref<512x128xbf16, #tpu.memory_space<vmem>>, %arg5: memref<1x128xf32, #tpu.memory_space<vmem>>, %arg6: memref<16x128xf32, #tpu.memory_space<vmem>>) attributes {dimension_semantics = [#tpu.dimension_semantics<parallel>], iteration_bounds = array<i64: 1>, scalar_prefetch = 0 : i64, scratch_operands = 0 : i64, tpu.core_type = #tpu.core_type<tc>, window_params = [{transform_indices = @transform_0, window_bounds = array<i64: 16, 64>}, {pipeline_mode = #tpu.pipeline_mode<synchronous>, transform_indices = @transform_1, window_bounds = array<i64: 64, 512>}, {pipeline_mode = #tpu.pipeline_mode<synchronous>, transform_indices = @transform_2, window_bounds = array<i64: 1, 512>}, {pipeline_mode = #tpu.pipeline_mode<synchronous>, transform_indices = @transform_3, window_bounds = array<i64: 512, 128>}, {pipeline_mode = #tpu.pipeline_mode<synchronous>, transform_indices = @transform_4, window_bounds = array<i64: 1, 128>}, {transform_indices = @transform_5, window_bounds = array<i64: 16, 128>}]} {
    %c0 = arith.constant 0 : index
    %c0_0 = arith.constant 0 : index
    %0 = vector.load %arg1[%c0, %c0_0] : memref<16x64xbf16, #tpu.memory_space<vmem>>, vector<16x64xbf16>
    %c0_1 = arith.constant 0 : index
    %c0_2 = arith.constant 0 : index
    %1 = vector.load %arg2[%c0_1, %c0_2] : memref<64x512xbf16, #tpu.memory_space<vmem>>, vector<64x512xbf16>
    %cst = arith.constant dense<0.000000e+00> : vector<16x512xf32>
    %2 = tpu.matmul %0, %1, %cst {dimension_numbers = #tpu.dot_dimension_numbers<[1], [0], [0], [1], [0, 0, 1, 1], [], []>} : vector<16x64xbf16>, vector<64x512xbf16>, vector<16x512xf32> -> vector<16x512xf32>
    %c0_3 = arith.constant 0 : index
    %c0_4 = arith.constant 0 : index
    %3 = vector.load %arg3[%c0_3, %c0_4] : memref<1x512xf32, #tpu.memory_space<vmem>>, vector<1x512xf32>
    %4 = vector.broadcast %3 : vector<1x512xf32> to vector<16x512xf32>
    %5 = arith.addf %2, %4 : vector<16x512xf32>
    %cst_5 = arith.constant 0.000000e+00 : f32
    %6 = vector.broadcast %cst_5 : f32 to vector<16x512xf32>
    %7 = arith.maximumf %5, %6 : vector<16x512xf32>
    %8 = arith.truncf %7 : vector<16x512xf32> to vector<16x512xbf16>
    %c0_6 = arith.constant 0 : index
    %c0_7 = arith.constant 0 : index
    %9 = vector.load %arg4[%c0_6, %c0_7] : memref<512x128xbf16, #tpu.memory_space<vmem>>, vector<512x128xbf16>
    %cst_8 = arith.constant dense<0.000000e+00> : vector<16x128xf32>
    %10 = tpu.matmul %8, %9, %cst_8 {dimension_numbers = #tpu.dot_dimension_numbers<[1], [0], [0], [1], [0, 0, 1, 1], [], []>} : vector<16x512xbf16>, vector<512x128xbf16>, vector<16x128xf32> -> vector<16x128xf32>
    %c0_9 = arith.constant 0 : index
    %c0_10 = arith.constant 0 : index
    %11 = vector.load %arg5[%c0_9, %c0_10] : memref<1x128xf32, #tpu.memory_space<vmem>>, vector<1x128xf32>
    %12 = vector.broadcast %11 : vector<1x128xf32> to vector<16x128xf32>
    %13 = arith.addf %10, %12 : vector<16x128xf32>
    %14 = tpu.iota {dimensions = array<i32: 1>} : vector<16x128xi32>
    %c6_i32 = arith.constant 6 : i32
    %15 = vector.broadcast %c6_i32 : i32 to vector<16x128xi32>
    %16 = arith.cmpi slt, %14, %15 : vector<16x128xi32>
    %17 = arith.extui %16 : vector<16x128xi1> to vector<16x128xi32>
    %18 = arith.sitofp %17 : vector<16x128xi32> to vector<16x128xf32>
    %c6_i32_11 = arith.constant 6 : i32
    %19 = vector.broadcast %c6_i32_11 : i32 to vector<16x128xi32>
    %20 = arith.cmpi eq, %14, %19 : vector<16x128xi32>
    %21 = arith.extui %20 : vector<16x128xi1> to vector<16x128xi32>
    %22 = arith.sitofp %21 : vector<16x128xi32> to vector<16x128xf32>
    %23 = arith.mulf %13, %18 : vector<16x128xf32>
    %cst_12 = arith.constant dense<0.000000e+00> : vector<16xf32>
    %24 = vector.multi_reduction <add>, %23, %cst_12 [1] : vector<16x128xf32> to vector<16xf32>
    %25 = vector.shape_cast %24 : vector<16xf32> to vector<16x1xf32>
    %cst_13 = arith.constant 0.166666672 : f32
    %26 = vector.broadcast %cst_13 : f32 to vector<16x1xf32>
    %27 = arith.mulf %25, %26 : vector<16x1xf32>
    %28 = arith.mulf %13, %22 : vector<16x128xf32>
    %cst_14 = arith.constant dense<0.000000e+00> : vector<16xf32>
    %29 = vector.multi_reduction <add>, %28, %cst_14 [1] : vector<16x128xf32> to vector<16xf32>
    %30 = vector.shape_cast %29 : vector<16xf32> to vector<16x1xf32>
    %31 = vector.broadcast %30 : vector<16x1xf32> to vector<16x128xf32>
    %32 = arith.addf %31, %13 : vector<16x128xf32>
    %33 = vector.broadcast %27 : vector<16x1xf32> to vector<16x128xf32>
    %34 = arith.subf %32, %33 : vector<16x128xf32>
    %c0_15 = arith.constant 0 : index
    %c0_16 = arith.constant 0 : index
    %35 = vector.load %arg6[%c0_15, %c0_16] : memref<16x128xf32, #tpu.memory_space<vmem>>, vector<16x128xf32>
    tpu.vector_store %arg6[%c0_15, %c0_16], %34 {strides = array<i32>} : memref<16x128xf32, #tpu.memory_space<vmem>>, vector<16x128xf32>,
    return
  }
  func.func @transform_0(%arg0: i32) -> (i32, i32) {
    %c0_i32 = arith.constant 0 : i32
    %c0_i32_0 = arith.constant 0 : i32
    return %arg0, %c0_i32 : i32, i32
  }
  func.func @transform_1(%arg0: i32) -> (i32, i32) {
    %c0_i32 = arith.constant 0 : i32
    %c0_i32_0 = arith.constant 0 : i32
    %c0_i32_1 = arith.constant 0 : i32
    return %c0_i32, %c0_i32_0 : i32, i32
  }
  func.func @transform_2(%arg0: i32) -> (i32, i32) {
    %c0_i32 = arith.constant 0 : i32
    %c0_i32_0 = arith.constant 0 : i32
    %c0_i32_1 = arith.constant 0 : i32
    return %c0_i32, %c0_i32_0 : i32, i32
  }
  func.func @transform_3(%arg0: i32) -> (i32, i32) {
    %c0_i32 = arith.constant 0 : i32
    %c0_i32_0 = arith.constant 0 : i32
    %c0_i32_1 = arith.constant 0 : i32
    return %c0_i32, %c0_i32_0 : i32, i32
  }
  func.func @transform_4(%arg0: i32) -> (i32, i32) {
    %c0_i32 = arith.constant 0 : i32
    %c0_i32_0 = arith.constant 0 : i32
    %c0_i32_1 = arith.constant 0 : i32
    return %c0_i32, %c0_i32_0 : i32, i32
  }
  func.func @transform_5(%arg0: i32) -> (i32, i32) {
    %c0_i32 = arith.constant 0 : i32
    %c0_i32_0 = arith.constant 0 : i32
    return %arg0, %c0_i32 : i32, i32
  }
}

</mosaic_0001>

<llo_original>
// kernel: cnn_forward.4
$region0: #{cnn_forward.4}
  #allocation0 [shape = 'u32[]', space=smem, size = 0x4, offset = 0x4, fixed_abs, tag = 'smem constant byte address 0x4 - core index']
  #allocation1 [shape = 'u32[144,128]{1,0:T(1,128)}', space=vmem, size = 0x12000, scoped, tag = 'internal scratch']
  %s0 = inlined_call_operand.vmem [shape: bf16[128,256], index: 0, kind: input, shape index: {}]
  %s1 = inlined_call_operand.vmem [shape: bf16[256,128], index: 1, kind: input, shape index: {}]
  %s2 = inlined_call_operand.vmem [shape: f32[1,128], index: 2, kind: input, shape index: {}]
  %s3 = inlined_call_operand.vmem [shape: bf16[128,128], index: 3, kind: output, shape index: {}]
  %s4 = sld [smem:[#allocation0]]
  $region22: #{cnn_forward.4} parent=0
    _
  %s6 = ssub.s32 1, %s4
  %s7 = scalar_select 0, %s6, %s4
  // Predicated region
  $region2: #{cnn_forward.4} parent=0 // pred_check
    _
  $region3: #{cnn_forward.4} parent=0 // pred_check_branch
    %9 = sbr.rel (0) target = $region5
  $region4: #{cnn_forward.4} parent=0 // pred_region
    _
  $region5: #{cnn_forward.4} parent=0 // pred_fallthru
    _
  // Predicated region
  $region6: #{cnn_forward.4} parent=0 // pred_check
    _
  $region7: #{cnn_forward.4} parent=0 // pred_check_branch
    %11 = sbr.rel (0) target = $region9
  $region8: #{cnn_forward.4} parent=0 // pred_region
    _
  $region9: #{cnn_forward.4} parent=0 // pred_fallthru
    _
  // Predicated region
  $region10: #{cnn_forward.4} parent=0 // pred_check
    _
  $region11: #{cnn_forward.4} parent=0 // pred_check_branch
    %13 = sbr.rel (0) target = $region13
  $region12: #{cnn_forward.4} parent=0 // pred_region
    _
  $region13: #{cnn_forward.4} parent=0 // pred_fallthru
    _
  %v15 = vld [vmem:[%s0] sm:$0xff]
  %v16 = vld [vmem:[%s0 + $0x8] sm:$0xff]
  %v17 = vld [vmem:[%s0 + $0x10] sm:$0xff]
  %v18 = vld [vmem:[%s0 + $0x18] sm:$0xff]
  %v19 = vld [vmem:[%s0 + $0x20] sm:$0xff]
  %v20 = vld [vmem:[%s0 + $0x28] sm:$0xff]
  %v21 = vld [vmem:[%s0 + $0x30] sm:$0xff]
  %v22 = vld [vmem:[%s0 + $0x38] sm:$0xff]
  %v23 = vld [vmem:[%s0 + $0x40] sm:$0xff]
  %v24 = vld [vmem:[%s0 + $0x48] sm:$0xff]
  %v25 = vld [vmem:[%s0 + $0x50] sm:$0xff]
  %v26 = vld [vmem:[%s0 + $0x58] sm:$0xff]
  %v27 = vld [vmem:[%s0 + $0x60] sm:$0xff]
  %v28 = vld [vmem:[%s0 + $0x68] sm:$0xff]
  %v29 = vld [vmem:[%s0 + $0x70] sm:$0xff]
  %v30 = vld [vmem:[%s0 + $0x78] sm:$0xff]
  %v31 = vld [vmem:[%s1] sm:$0xf]
  %v32 = vld [vmem:[%s1 + $0x4] sm:$0xf]
  %v33 = vld [vmem:[%s1 + $0x8] sm:$0xf]
  %v34 = vld [vmem:[%s1 + $0xc] sm:$0xf]
  %v35 = vld [vmem:[%s1 + $0x10] sm:$0xf]
  %v36 = vld [vmem:[%s1 + $0x14] sm:$0xf]
  %v37 = vld [vmem:[%s1 + $0x18] sm:$0xf]
  %v38 = vld [vmem:[%s1 + $0x1c] sm:$0xf]
  %v39 = vld [vmem:[%s1 + $0x20] sm:$0xf]
  %v40 = vld [vmem:[%s1 + $0x24] sm:$0xf]
  %v41 = vld [vmem:[%s1 + $0x28] sm:$0xf]
  %v42 = vld [vmem:[%s1 + $0x2c] sm:$0xf]
  %v43 = vld [vmem:[%s1 + $0x30] sm:$0xf]
  %v44 = vld [vmem:[%s1 + $0x34] sm:$0xf]
  %v45 = vld [vmem:[%s1 + $0x38] sm:$0xf]
  %v46 = vld [vmem:[%s1 + $0x3c] sm:$0xf]
  %v47 = vld [vmem:[%s1 + $0x40] sm:$0xf]
  %v48 = vld [vmem:[%s1 + $0x44] sm:$0xf]
  %v49 = vld [vmem:[%s1 + $0x48] sm:$0xf]
  %v50 = vld [vmem:[%s1 + $0x4c] sm:$0xf]
  %v51 = vld [vmem:[%s1 + $0x50] sm:$0xf]
  %v52 = vld [vmem:[%s1 + $0x54] sm:$0xf]
  %v53 = vld [vmem:[%s1 + $0x58] sm:$0xf]
  %v54 = vld [vmem:[%s1 + $0x5c] sm:$0xf]
  %v55 = vld [vmem:[%s1 + $0x60] sm:$0xf]
  %v56 = vld [vmem:[%s1 + $0x64] sm:$0xf]
  %v57 = vld [vmem:[%s1 + $0x68] sm:$0xf]
  %v58 = vld [vmem:[%s1 + $0x6c] sm:$0xf]
  %v59 = vld [vmem:[%s1 + $0x70] sm:$0xf]
  %v60 = vld [vmem:[%s1 + $0x74] sm:$0xf]
  %v61 = vld [vmem:[%s1 + $0x78] sm:$0xf]
  %v62 = vld [vmem:[%s1 + $0x7c] sm:$0xf]
  %v63 = vld [vmem:[%s2] sm:$0x1]
  %v65 = vlaneseq
  %v66 = vshrl.u32 %v65, 7
  %v67 = vsub.s32 0, %v66
  %v68 = vrot.slane %v63, %v67
  %v86 = vunpack.c.l.b16 %v15
  %v87 = vunpack.c.h.b16 %v15
  %v88 = vunpack.c.l.b16 %v16
  %v89 = vunpack.c.h.b16 %v16
  %v90 = vunpack.c.l.b16 %v17
  %v91 = vunpack.c.h.b16 %v17
  %v92 = vunpack.c.l.b16 %v18
  %v93 = vunpack.c.h.b16 %v18
  %v94 = vunpack.c.l.b16 %v19
  %v95 = vunpack.c.h.b16 %v19
  %v96 = vunpack.c.l.b16 %v20
  %v97 = vunpack.c.h.b16 %v20
  %v98 = vunpack.c.l.b16 %v21
  %v99 = vunpack.c.h.b16 %v21
  %v100 = vunpack.c.l.b16 %v22
  %v101 = vunpack.c.h.b16 %v22
  %v102 = vunpack.c.l.b16 %v23
  %v103 = vunpack.c.h.b16 %v23
  %v104 = vunpack.c.l.b16 %v24
  %v105 = vunpack.c.h.b16 %v24
  %v106 = vunpack.c.l.b16 %v25
  %v107 = vunpack.c.h.b16 %v25
  %v108 = vunpack.c.l.b16 %v26
  %v109 = vunpack.c.h.b16 %v26
  %v110 = vunpack.c.l.b16 %v27
  %v111 = vunpack.c.h.b16 %v27
  %v112 = vunpack.c.l.b16 %v28
  %v113 = vunpack.c.h.b16 %v28
  %v114 = vunpack.c.l.b16 %v29
  %v115 = vunpack.c.h.b16 %v29
  %v116 = vunpack.c.l.b16 %v30
  %v117 = vunpack.c.h.b16 %v30
  %v118 = vpack.c.b16 %v88, %v86
  %v119 = vpack.c.b16 %v89, %v87
  %v120 = vpack.c.b16 %v92, %v90
  %v121 = vpack.c.b16 %v93, %v91
  %v122 = vpack.c.b16 %v96, %v94
  %v123 = vpack.c.b16 %v97, %v95
  %v124 = vpack.c.b16 %v100, %v98
  %v125 = vpack.c.b16 %v101, %v99
  %v126 = vpack.c.b16 %v104, %v102
  %v127 = vpack.c.b16 %v105, %v103
  %v128 = vpack.c.b16 %v108, %v106
  %v129 = vpack.c.b16 %v109, %v107
  %v130 = vpack.c.b16 %v112, %v110
  %v131 = vpack.c.b16 %v113, %v111
  %v132 = vpack.c.b16 %v116, %v114
  %v133 = vpack.c.b16 %v117, %v115
  %v182 = vunpack.c.l.b16 %v31
  %v183 = vunpack.c.l.b16 %v32
  %v184 = vunpack.c.l.b16 %v33
  %v185 = vunpack.c.l.b16 %v34
  %v186 = vunpack.c.l.b16 %v35
  %v187 = vunpack.c.l.b16 %v36
  %v188 = vunpack.c.l.b16 %v37
  %v189 = vunpack.c.l.b16 %v38
  %v190 = vunpack.c.l.b16 %v39
  %v191 = vunpack.c.l.b16 %v40
  %v192 = vunpack.c.l.b16 %v41
  %v193 = vunpack.c.l.b16 %v42
  %v194 = vunpack.c.l.b16 %v43
  %v195 = vunpack.c.l.b16 %v44
  %v196 = vunpack.c.l.b16 %v45
  %v197 = vunpack.c.l.b16 %v46
  %v198 = vunpack.c.l.b16 %v47
  %v199 = vunpack.c.l.b16 %v48
  %v200 = vunpack.c.l.b16 %v49
  %v201 = vunpack.c.l.b16 %v50
  %v202 = vunpack.c.l.b16 %v51
  %v203 = vunpack.c.l.b16 %v52
  %v204 = vunpack.c.l.b16 %v53
  %v205 = vunpack.c.l.b16 %v54
  %v206 = vunpack.c.l.b16 %v55
  %v207 = vunpack.c.l.b16 %v56
  %v208 = vunpack.c.l.b16 %v57
  %v209 = vunpack.c.l.b16 %v58
  %v210 = vunpack.c.l.b16 %v59
  %v211 = vunpack.c.l.b16 %v60
  %v212 = vunpack.c.l.b16 %v61
  %v213 = vunpack.c.l.b16 %v62
  %v214 = vpack.c.b16 %v183, %v182
  %v215 = vpack.c.b16 %v185, %v184
  %v216 = vpack.c.b16 %v187, %v186
  %v217 = vpack.c.b16 %v189, %v188
  %v218 = vpack.c.b16 %v191, %v190
  %v219 = vpack.c.b16 %v193, %v192
  %v220 = vpack.c.b16 %v195, %v194
  %v221 = vpack.c.b16 %v197, %v196
  %v222 = vpack.c.b16 %v199, %v198
  %v223 = vpack.c.b16 %v201, %v200
  %v224 = vpack.c.b16 %v203, %v202
  %v225 = vpack.c.b16 %v205, %v204
  %v226 = vpack.c.b16 %v207, %v206
  %v227 = vpack.c.b16 %v209, %v208
  %v228 = vpack.c.b16 %v211, %v210
  %v229 = vpack.c.b16 %v213, %v212
  %246 = vmatprep.subr.bf16.mxu0 0
  %247 = vmatpush1.bf16.msra.mxu0 %v221
  %248 = vmatprep.subr.bf16.mxu0 0
  %249 = vmatpush1.bf16.msra.mxu0 %v220
  %250 = vmatprep.subr.bf16.mxu0 0
  %251 = vmatpush1.bf16.msra.mxu0 %v219
  %252 = vmatprep.subr.bf16.mxu0 0
  %253 = vmatpush1.bf16.msra.mxu0 %v218
  %254 = vmatprep.subr.bf16.mxu0 0
  %255 = vmatpush1.bf16.msra.mxu0 %v217
  %256 = vmatprep.subr.bf16.mxu0 0
  %257 = vmatpush1.bf16.msra.mxu0 %v216
  %258 = vmatprep.subr.bf16.mxu0 0
  %259 = vmatpush1.bf16.msra.mxu0 %v215
  %260 = vmatprep.subr.bf16.mxu0 0
  %261 = vmatpush1.bf16.msra.mxu0 %v214
  %262 = vmatprep.subr.bf16.mxu0 0
  %263 = vmatpush2.bf16.msra.mxu0 %v229
  %264 = vmatprep.subr.bf16.mxu0 0
  %265 = vmatpush2.bf16.msra.mxu0 %v228
  %266 = vmatprep.subr.bf16.mxu0 0
  %267 = vmatpush2.bf16.msra.mxu0 %v227
  %268 = vmatprep.subr.bf16.mxu0 0
  %269 = vmatpush2.bf16.msra.mxu0 %v226
  %270 = vmatprep.subr.bf16.mxu0 0
  %271 = vmatpush2.bf16.msra.mxu0 %v225
  %272 = vmatprep.subr.bf16.mxu0 0
  %273 = vmatpush2.bf16.msra.mxu0 %v224
  %274 = vmatprep.subr.bf16.mxu0 0
  %275 = vmatpush2.bf16.msra.mxu0 %v223
  %276 = vmatprep.subr.bf16.mxu0 0
  %277 = vmatpush2.bf16.msra.mxu0 %v222
  %278 = vmatprep.mubr.bf16.mxu0 %v119
  %279 = vmatmul.mubr.bf16.gmra.mxu0 %v118
  %v280 = vpop.f32.mrf.mxu0
  %v281 = vadd.f32 %v68, %v280
  %v282 = vpop.f32.mrf.mxu0
  %v283 = vpop.f32.mrf.mxu0
  %v284 = vadd.f32 %v68, %v283
  %v285 = vpop.f32.mrf.mxu0
  %286 = vmatprep.mubr.bf16.mxu0 %v121
  %287 = vmatmul.mubr.bf16.gmra.mxu0 %v120
  %v288 = vpop.f32.mrf.mxu0
  %v289 = vadd.f32 %v68, %v288
  %v290 = vpop.f32.mrf.mxu0
  %v291 = vpop.f32.mrf.mxu0
  %v292 = vadd.f32 %v68, %v291
  %v293 = vpop.f32.mrf.mxu0
  %294 = vmatprep.mubr.bf16.mxu0 %v123
  %295 = vmatmul.mubr.bf16.gmra.mxu0 %v122
  %v296 = vpop.f32.mrf.mxu0
  %v297 = vadd.f32 %v68, %v296
  %v298 = vpop.f32.mrf.mxu0
  %v299 = vpop.f32.mrf.mxu0
  %v300 = vadd.f32 %v68, %v299
  %v301 = vpop.f32.mrf.mxu0
  %302 = vmatprep.mubr.bf16.mxu0 %v125
  %303 = vmatmul.mubr.bf16.gmra.mxu0 %v124
  %v304 = vpop.f32.mrf.mxu0
  %v305 = vadd.f32 %v68, %v304
  %v306 = vpop.f32.mrf.mxu0
  %v307 = vpop.f32.mrf.mxu0
  %v308 = vadd.f32 %v68, %v307
  %v309 = vpop.f32.mrf.mxu0
  %310 = vmatprep.mubr.bf16.mxu0 %v127
  %311 = vmatmul.mubr.bf16.gmra.mxu0 %v126
  %v312 = vpop.f32.mrf.mxu0
  %v313 = vadd.f32 %v68, %v312
  %v314 = vpop.f32.mrf.mxu0
  %v315 = vpop.f32.mrf.mxu0
  %v316 = vadd.f32 %v68, %v315
  %v317 = vpop.f32.mrf.mxu0
  %318 = vmatprep.mubr.bf16.mxu0 %v129
  %319 = vmatmul.mubr.bf16.gmra.mxu0 %v128
  %v320 = vpop.f32.mrf.mxu0
  %v321 = vadd.f32 %v68, %v320
  %v322 = vpop.f32.mrf.mxu0
  %v323 = vpop.f32.mrf.mxu0
  %v324 = vadd.f32 %v68, %v323
  %v325 = vpop.f32.mrf.mxu0
  %326 = vmatprep.mubr.bf16.mxu0 %v131
  %327 = vmatmul.mubr.bf16.gmra.mxu0 %v130
  %v328 = vpop.f32.mrf.mxu0
  %v329 = vadd.f32 %v68, %v328
  %v330 = vpop.f32.mrf.mxu0
  %v331 = vpop.f32.mrf.mxu0
  %v332 = vadd.f32 %v68, %v331
  %v333 = vpop.f32.mrf.mxu0
  %334 = vmatprep.mubr.bf16.mxu0 %v133
  %335 = vmatmul.mubr.bf16.gmra.mxu0 %v132
  %v336 = vpop.f32.mrf.mxu0
  %v337 = vadd.f32 %v68, %v336
  %v338 = vpop.f32.mrf.mxu0
  %v339 = vpop.f32.mrf.mxu0
  %v340 = vadd.f32 %v68, %v339
  %v341 = vpop.f32.mrf.mxu0
  %342 = vdwg.mxu0
  %v343 = vmax.f32 %v281, 0.0
  %v344 = vmax.f32 %v284, 0.0
  %v345 = vmax.f32 %v289, 0.0
  %v346 = vmax.f32 %v292, 0.0
  %v347 = vmax.f32 %v297, 0.0
  %v348 = vmax.f32 %v300, 0.0
  %v349 = vmax.f32 %v305, 0.0
  %v350 = vmax.f32 %v308, 0.0
  %v351 = vmax.f32 %v313, 0.0
  %v352 = vmax.f32 %v316, 0.0
  %v353 = vmax.f32 %v321, 0.0
  %v354 = vmax.f32 %v324, 0.0
  %v355 = vmax.f32 %v329, 0.0
  %v356 = vmax.f32 %v332, 0.0
  %v357 = vmax.f32 %v337, 0.0
  %v358 = vmax.f32 %v340, 0.0
  %v359 = vpack.c.bf16 %v344, %v343
  %v360 = vpack.c.bf16 %v346, %v345
  %v361 = vpack.c.bf16 %v348, %v347
  %v362 = vpack.c.bf16 %v350, %v349
  %v363 = vpack.c.bf16 %v352, %v351
  %v364 = vpack.c.bf16 %v354, %v353
  %v365 = vpack.c.bf16 %v356, %v355
  %v366 = vpack.c.bf16 %v358, %v357
  %v375 = vunpack.c.l.b16 %v359
  %v376 = vunpack.c.h.b16 %v359
  %v377 = vunpack.c.l.b16 %v360
  %v378 = vunpack.c.h.b16 %v360
  %v379 = vunpack.c.l.b16 %v361
  %v380 = vunpack.c.h.b16 %v361
  %v381 = vunpack.c.l.b16 %v362
  %v382 = vunpack.c.h.b16 %v362
  %v383 = vunpack.c.l.b16 %v363
  %v384 = vunpack.c.h.b16 %v363
  %v385 = vunpack.c.l.b16 %v364
  %v386 = vunpack.c.h.b16 %v364
  %v387 = vunpack.c.l.b16 %v365
  %v388 = vunpack.c.h.b16 %v365
  %v389 = vunpack.c.l.b16 %v366
  %v390 = vunpack.c.h.b16 %v366
  %v391 = vpack.c.b16 %v375, %v375
  %v392 = vpack.c.b16 %v376, %v376
  %v393 = vpack.c.b16 %v377, %v377
  %v394 = vpack.c.b16 %v378, %v378
  %v395 = vpack.c.b16 %v379, %v379
  %v396 = vpack.c.b16 %v380, %v380
  %v397 = vpack.c.b16 %v381, %v381
  %v398 = vpack.c.b16 %v382, %v382
  %v399 = vpack.c.b16 %v383, %v383
  %v400 = vpack.c.b16 %v384, %v384
  %v401 = vpack.c.b16 %v385, %v385
  %v402 = vpack.c.b16 %v386, %v386
  %v403 = vpack.c.b16 %v387, %v387
  %v404 = vpack.c.b16 %v388, %v388
  %v405 = vpack.c.b16 %v389, %v389
  %v406 = vpack.c.b16 %v390, %v390
  %423 = vst [vmem:[%s3] sm:$0xf] %v391
  %424 = vst [vmem:[%s3 + $0x4] sm:$0xf] %v392
  %425 = vst [vmem:[%s3 + $0x8] sm:$0xf] %v393
  %426 = vst [vmem:[%s3 + $0xc] sm:$0xf] %v394
  %427 = vst [vmem:[%s3 + $0x10] sm:$0xf] %v395
  %428 = vst [vmem:[%s3 + $0x14] sm:$0xf] %v396
  %429 = vst [vmem:[%s3 + $0x18] sm:$0xf] %v397
  %430 = vst [vmem:[%s3 + $0x1c] sm:$0xf] %v398
  %431 = vst [vmem:[%s3 + $0x20] sm:$0xf] %v399
  %432 = vst [vmem:[%s3 + $0x24] sm:$0xf] %v400
  %433 = vst [vmem:[%s3 + $0x28] sm:$0xf] %v401
  %434 = vst [vmem:[%s3 + $0x2c] sm:$0xf] %v402
  %435 = vst [vmem:[%s3 + $0x30] sm:$0xf] %v403
  %436 = vst [vmem:[%s3 + $0x34] sm:$0xf] %v404
  %437 = vst [vmem:[%s3 + $0x38] sm:$0xf] %v405
  %438 = vst [vmem:[%s3 + $0x3c] sm:$0xf] %v406
  // Predicated region
  $region14: #{cnn_forward.4} parent=0 // pred_check
    _
  $region15: #{cnn_forward.4} parent=0 // pred_check_branch
    %440 = sbr.rel (0) target = $region17
  $region16: #{cnn_forward.4} parent=0 // pred_region
    _
  $region17: #{cnn_forward.4} parent=0 // pred_fallthru
    _
  // Predicated region
  $region18: #{cnn_forward.4} parent=0 // pred_check
    _
  $region19: #{cnn_forward.4} parent=0 // pred_check_branch
    %442 = sbr.rel (0) target = $region21
  $region20: #{cnn_forward.4} parent=0 // pred_region
    _
  $region21: #{cnn_forward.4} parent=0 // pred_fallthru
    _

// kernel: cnn_forward.5
$region0: #{cnn_forward.5}
  #allocation0 [shape = 'u32[]', space=smem, size = 0x4, offset = 0x4, fixed_abs, tag = 'smem constant byte address 0x4 - core index']
  #allocation1 [shape = 'u32[144,128]{1,0:T(1,128)}', space=vmem, size = 0x12000, scoped, tag = 'internal scratch']
  %s0 = inlined_call_operand.vmem [shape: bf16[32,512], index: 0, kind: input, shape index: {}]
  %s1 = inlined_call_operand.vmem [shape: bf16[512,128], index: 1, kind: input, shape index: {}]
  %s2 = inlined_call_operand.vmem [shape: f32[1,128], index: 2, kind: input, shape index: {}]
  %s3 = inlined_call_operand.vmem [shape: bf16[32,128], index: 3, kind: output, shape index: {}]
  %s4 = sld [smem:[#allocation0]]
  $region22: #{cnn_forward.5} parent=0
    _
  %s6 = ssub.s32 1, %s4
  %s7 = scalar_select 0, %s6, %s4
  // Predicated region
  $region2: #{cnn_forward.5} parent=0 // pred_check
    _
  $region3: #{cnn_forward.5} parent=0 // pred_check_branch
    %9 = sbr.rel (0) target = $region5
  $region4: #{cnn_forward.5} parent=0 // pred_region
    _
  $region5: #{cnn_forward.5} parent=0 // pred_fallthru
    _
  // Predicated region
  $region6: #{cnn_forward.5} parent=0 // pred_check
    _
  $region7: #{cnn_forward.5} parent=0 // pred_check_branch
    %11 = sbr.rel (0) target = $region9
  $region8: #{cnn_forward.5} parent=0 // pred_region
    _
  $region9: #{cnn_forward.5} parent=0 // pred_fallthru
    _
  // Predicated region
  $region10: #{cnn_forward.5} parent=0 // pred_check
    _
  $region11: #{cnn_forward.5} parent=0 // pred_check_branch
    %13 = sbr.rel (0) target = $region13
  $region12: #{cnn_forward.5} parent=0 // pred_region
    _
  $region13: #{cnn_forward.5} parent=0 // pred_fallthru
    _
  %v15 = vld [vmem:[%s0] sm:$0xff]
  %v16 = vld [vmem:[%s0 + $0x8] sm:$0xff]
  %v17 = vld [vmem:[%s0 + $0x10] sm:$0xff]
  %v18 = vld [vmem:[%s0 + $0x18] sm:$0xff]
  %v19 = vld [vmem:[%s0 + $0x20] sm:$0xff]
  %v20 = vld [vmem:[%s0 + $0x28] sm:$0xff]
  %v21 = vld [vmem:[%s0 + $0x30] sm:$0xff]
  %v22 = vld [vmem:[%s0 + $0x38] sm:$0xff]
  %v23 = vld [vmem:[%s1] sm:$0xf]
  %v24 = vld [vmem:[%s1 + $0x4] sm:$0xf]
  %v25 = vld [vmem:[%s1 + $0x8] sm:$0xf]
  %v26 = vld [vmem:[%s1 + $0xc] sm:$0xf]
  %v27 = vld [vmem:[%s1 + $0x10] sm:$0xf]
  %v28 = vld [vmem:[%s1 + $0x14] sm:$0xf]
  %v29 = vld [vmem:[%s1 + $0x18] sm:$0xf]
  %v30 = vld [vmem:[%s1 + $0x1c] sm:$0xf]
  %v31 = vld [vmem:[%s1 + $0x20] sm:$0xf]
  %v32 = vld [vmem:[%s1 + $0x24] sm:$0xf]
  %v33 = vld [vmem:[%s1 + $0x28] sm:$0xf]
  %v34 = vld [vmem:[%s1 + $0x2c] sm:$0xf]
  %v35 = vld [vmem:[%s1 + $0x30] sm:$0xf]
  %v36 = vld [vmem:[%s1 + $0x34] sm:$0xf]
  %v37 = vld [vmem:[%s1 + $0x38] sm:$0xf]
  %v38 = vld [vmem:[%s1 + $0x3c] sm:$0xf]
  %v39 = vld [vmem:[%s1 + $0x40] sm:$0xf]
  %v40 = vld [vmem:[%s1 + $0x44] sm:$0xf]
  %v41 = vld [vmem:[%s1 + $0x48] sm:$0xf]
  %v42 = vld [vmem:[%s1 + $0x4c] sm:$0xf]
  %v43 = vld [vmem:[%s1 + $0x50] sm:$0xf]
  %v44 = vld [vmem:[%s1 + $0x54] sm:$0xf]
  %v45 = vld [vmem:[%s1 + $0x58] sm:$0xf]
  %v46 = vld [vmem:[%s1 + $0x5c] sm:$0xf]
  %v47 = vld [vmem:[%s1 + $0x60] sm:$0xf]
  %v48 = vld [vmem:[%s1 + $0x64] sm:$0xf]
  %v49 = vld [vmem:[%s1 + $0x68] sm:$0xf]
  %v50 = vld [vmem:[%s1 + $0x6c] sm:$0xf]
  %v51 = vld [vmem:[%s1 + $0x70] sm:$0xf]
  %v52 = vld [vmem:[%s1 + $0x74] sm:$0xf]
  %v53 = vld [vmem:[%s1 + $0x78] sm:$0xf]
  %v54 = vld [vmem:[%s1 + $0x7c] sm:$0xf]
  %v55 = vld [vmem:[%s1 + $0x80] sm:$0xf]
  %v56 = vld [vmem:[%s1 + $0x84] sm:$0xf]
  %v57 = vld [vmem:[%s1 + $0x88] sm:$0xf]
  %v58 = vld [vmem:[%s1 + $0x8c] sm:$0xf]
  %v59 = vld [vmem:[%s1 + $0x90] sm:$0xf]
  %v60 = vld [vmem:[%s1 + $0x94] sm:$0xf]
  %v61 = vld [vmem:[%s1 + $0x98] sm:$0xf]
  %v62 = vld [vmem:[%s1 + $0x9c] sm:$0xf]
  %v63 = vld [vmem:[%s1 + $0xa0] sm:$0xf]
  %v64 = vld [vmem:[%s1 + $0xa4] sm:$0xf]
  %v65 = vld [vmem:[%s1 + $0xa8] sm:$0xf]
  %v66 = vld [vmem:[%s1 + $0xac] sm:$0xf]
  %v67 = vld [vmem:[%s1 + $0xb0] sm:$0xf]
  %v68 = vld [vmem:[%s1 + $0xb4] sm:$0xf]
  %v69 = vld [vmem:[%s1 + $0xb8] sm:$0xf]
  %v70 = vld [vmem:[%s1 + $0xbc] sm:$0xf]
  %v71 = vld [vmem:[%s1 + $0xc0] sm:$0xf]
  %v72 = vld [vmem:[%s1 + $0xc4] sm:$0xf]
  %v73 = vld [vmem:[%s1 + $0xc8] sm:$0xf]
  %v74 = vld [vmem:[%s1 + $0xcc] sm:$0xf]
  %v75 = vld [vmem:[%s1 + $0xd0] sm:$0xf]
  %v76 = vld [vmem:[%s1 + $0xd4] sm:$0xf]
  %v77 = vld [vmem:[%s1 + $0xd8] sm:$0xf]
  %v78 = vld [vmem:[%s1 + $0xdc] sm:$0xf]
  %v79 = vld [vmem:[%s1 + $0xe0] sm:$0xf]
  %v80 = vld [vmem:[%s1 + $0xe4] sm:$0xf]
  %v81 = vld [vmem:[%s1 + $0xe8] sm:$0xf]
  %v82 = vld [vmem:[%s1 + $0xec] sm:$0xf]
  %v83 = vld [vmem:[%s1 + $0xf0] sm:$0xf]
  %v84 = vld [vmem:[%s1 + $0xf4] sm:$0xf]
  %v85 = vld [vmem:[%s1 + $0xf8] sm:$0xf]
  %v86 = vld [vmem:[%s1 + $0xfc] sm:$0xf]
  %v87 = vld [vmem:[%s2] sm:$0x1]
  %v89 = vlaneseq
  %v90 = vshrl.u32 %v89, 7
  %v91 = vsub.s32 0, %v90
  %v92 = vrot.slane %v87, %v91
  %v102 = vunpack.c.l.b16 %v15
  %v103 = vunpack.c.h.b16 %v15
  %v104 = vunpack.c.l.b16 %v16
  %v105 = vunpack.c.h.b16 %v16
  %v106 = vunpack.c.l.b16 %v17
  %v107 = vunpack.c.h.b16 %v17
  %v108 = vunpack.c.l.b16 %v18
  %v109 = vunpack.c.h.b16 %v18
  %v110 = vunpack.c.l.b16 %v19
  %v111 = vunpack.c.h.b16 %v19
  %v112 = vunpack.c.l.b16 %v20
  %v113 = vunpack.c.h.b16 %v20
  %v114 = vunpack.c.l.b16 %v21
  %v115 = vunpack.c.h.b16 %v21
  %v116 = vunpack.c.l.b16 %v22
  %v117 = vunpack.c.h.b16 %v22
  %v118 = vpack.c.b16 %v106, %v102
  %v119 = vpack.c.b16 %v107, %v103
  %v120 = vpack.c.b16 %v108, %v104
  %v121 = vpack.c.b16 %v109, %v105
  %v122 = vpack.c.b16 %v114, %v110
  %v123 = vpack.c.b16 %v115, %v111
  %v124 = vpack.c.b16 %v116, %v112
  %v125 = vpack.c.b16 %v117, %v113
  %v198 = vunpack.c.l.b16 %v23
  %v199 = vunpack.c.l.b16 %v24
  %v200 = vunpack.c.l.b16 %v25
  %v201 = vunpack.c.l.b16 %v26
  %v202 = vunpack.c.l.b16 %v27
  %v203 = vunpack.c.l.b16 %v28
  %v204 = vunpack.c.l.b16 %v29
  %v205 = vunpack.c.l.b16 %v30
  %v206 = vunpack.c.l.b16 %v31
  %v207 = vunpack.c.l.b16 %v32
  %v208 = vunpack.c.l.b16 %v33
  %v209 = vunpack.c.l.b16 %v34
  %v210 = vunpack.c.l.b16 %v35
  %v211 = vunpack.c.l.b16 %v36
  %v212 = vunpack.c.l.b16 %v37
  %v213 = vunpack.c.l.b16 %v38
  %v214 = vunpack.c.l.b16 %v39
  %v215 = vunpack.c.l.b16 %v40
  %v216 = vunpack.c.l.b16 %v41
  %v217 = vunpack.c.l.b16 %v42
  %v218 = vunpack.c.l.b16 %v43
  %v219 = vunpack.c.l.b16 %v44
  %v220 = vunpack.c.l.b16 %v45
  %v221 = vunpack.c.l.b16 %v46
  %v222 = vunpack.c.l.b16 %v47
  %v223 = vunpack.c.l.b16 %v48
  %v224 = vunpack.c.l.b16 %v49
  %v225 = vunpack.c.l.b16 %v50
  %v226 = vunpack.c.l.b16 %v51
  %v227 = vunpack.c.l.b16 %v52
  %v228 = vunpack.c.l.b16 %v53
  %v229 = vunpack.c.l.b16 %v54
  %v230 = vunpack.c.l.b16 %v55
  %v231 = vunpack.c.l.b16 %v56
  %v232 = vunpack.c.l.b16 %v57
  %v233 = vunpack.c.l.b16 %v58
  %v234 = vunpack.c.l.b16 %v59
  %v235 = vunpack.c.l.b16 %v60
  %v236 = vunpack.c.l.b16 %v61
  %v237 = vunpack.c.l.b16 %v62
  %v238 = vunpack.c.l.b16 %v63
  %v239 = vunpack.c.l.b16 %v64
  %v240 = vunpack.c.l.b16 %v65
  %v241 = vunpack.c.l.b16 %v66
  %v242 = vunpack.c.l.b16 %v67
  %v243 = vunpack.c.l.b16 %v68
  %v244 = vunpack.c.l.b16 %v69
  %v245 = vunpack.c.l.b16 %v70
  %v246 = vunpack.c.l.b16 %v71
  %v247 = vunpack.c.l.b16 %v72
  %v248 = vunpack.c.l.b16 %v73
  %v249 = vunpack.c.l.b16 %v74
  %v250 = vunpack.c.l.b16 %v75
  %v251 = vunpack.c.l.b16 %v76
  %v252 = vunpack.c.l.b16 %v77
  %v253 = vunpack.c.l.b16 %v78
  %v254 = vunpack.c.l.b16 %v79
  %v255 = vunpack.c.l.b16 %v80
  %v256 = vunpack.c.l.b16 %v81
  %v257 = vunpack.c.l.b16 %v82
  %v258 = vunpack.c.l.b16 %v83
  %v259 = vunpack.c.l.b16 %v84
  %v260 = vunpack.c.l.b16 %v85
  %v261 = vunpack.c.l.b16 %v86
  %v262 = vpack.c.b16 %v199, %v198
  %v263 = vpack.c.b16 %v201, %v200
  %v264 = vpack.c.b16 %v203, %v202
  %v265 = vpack.c.b16 %v205, %v204
  %v266 = vpack.c.b16 %v207, %v206
  %v267 = vpack.c.b16 %v209, %v208
  %v268 = vpack.c.b16 %v211, %v210
  %v269 = vpack.c.b16 %v213, %v212
  %v270 = vpack.c.b16 %v215, %v214
  %v271 = vpack.c.b16 %v217, %v216
  %v272 = vpack.c.b16 %v219, %v218
  %v273 = vpack.c.b16 %v221, %v220
  %v274 = vpack.c.b16 %v223, %v222
  %v275 = vpack.c.b16 %v225, %v224
  %v276 = vpack.c.b16 %v227, %v226
  %v277 = vpack.c.b16 %v229, %v228
  %v278 = vpack.c.b16 %v231, %v230
  %v279 = vpack.c.b16 %v233, %v232
  %v280 = vpack.c.b16 %v235, %v234
  %v281 = vpack.c.b16 %v237, %v236
  %v282 = vpack.c.b16 %v239, %v238
  %v283 = vpack.c.b16 %v241, %v240
  %v284 = vpack.c.b16 %v243, %v242
  %v285 = vpack.c.b16 %v245, %v244
  %v286 = vpack.c.b16 %v247, %v246
  %v287 = vpack.c.b16 %v249, %v248
  %v288 = vpack.c.b16 %v251, %v250
  %v289 = vpack.c.b16 %v253, %v252
  %v290 = vpack.c.b16 %v255, %v254
  %v291 = vpack.c.b16 %v257, %v256
  %v292 = vpack.c.b16 %v259, %v258
  %v293 = vpack.c.b16 %v261, %v260
  %326 = vmatprep.subr.bf16.mxu0 0
  %327 = vmatpush1.bf16.msra.mxu0 %v269
  %328 = vmatprep.subr.bf16.mxu0 0
  %329 = vmatpush1.bf16.msra.mxu0 %v268
  %330 = vmatprep.subr.bf16.mxu0 0
  %331 = vmatpush1.bf16.msra.mxu0 %v267
  %332 = vmatprep.subr.bf16.mxu0 0
  %333 = vmatpush1.bf16.msra.mxu0 %v266
  %334 = vmatprep.subr.bf16.mxu0 0
  %335 = vmatpush1.bf16.msra.mxu0 %v265
  %336 = vmatprep.subr.bf16.mxu0 0
  %337 = vmatpush1.bf16.msra.mxu0 %v264
  %338 = vmatprep.subr.bf16.mxu0 0
  %339 = vmatpush1.bf16.msra.mxu0 %v263
  %340 = vmatprep.subr.bf16.mxu0 0
  %341 = vmatpush1.bf16.msra.mxu0 %v262
  %342 = vmatprep.subr.bf16.mxu0 0
  %343 = vmatpush2.bf16.msra.mxu0 %v277
  %344 = vmatprep.subr.bf16.mxu0 0
  %345 = vmatpush2.bf16.msra.mxu0 %v276
  %346 = vmatprep.subr.bf16.mxu0 0
  %347 = vmatpush2.bf16.msra.mxu0 %v275
  %348 = vmatprep.subr.bf16.mxu0 0
  %349 = vmatpush2.bf16.msra.mxu0 %v274
  %350 = vmatprep.subr.bf16.mxu0 0
  %351 = vmatpush2.bf16.msra.mxu0 %v273
  %352 = vmatprep.subr.bf16.mxu0 0
  %353 = vmatpush2.bf16.msra.mxu0 %v272
  %354 = vmatprep.subr.bf16.mxu0 0
  %355 = vmatpush2.bf16.msra.mxu0 %v271
  %356 = vmatprep.subr.bf16.mxu0 0
  %357 = vmatpush2.bf16.msra.mxu0 %v270
  %358 = vmatprep.mubr.bf16.mxu0 %v119
  %359 = vmatmul.mubr.bf16.gmra.mxu0 %v118
  %v360 = vpop.f32.mrf.mxu0
  %v361 = vadd.f32 %v92, %v360
  %v362 = vpop.f32.mrf.mxu0
  %v363 = vpop.f32.mrf.mxu0
  %v364 = vadd.f32 %v92, %v363
  %v365 = vpop.f32.mrf.mxu0
  %366 = vmatprep.mubr.bf16.mxu0 %v123
  %367 = vmatmul.mubr.bf16.gmra.mxu0 %v122
  %v368 = vpop.f32.mrf.mxu0
  %v369 = vadd.f32 %v92, %v368
  %v370 = vpop.f32.mrf.mxu0
  %v371 = vpop.f32.mrf.mxu0
  %v372 = vadd.f32 %v92, %v371
  %v373 = vpop.f32.mrf.mxu0
  %374 = vdwg.mxu0
  %375 = vmatprep.subr.bf16.mxu0 0
  %376 = vmatpush1.bf16.msra.mxu0 %v285
  %377 = vmatprep.subr.bf16.mxu0 0
  %378 = vmatpush1.bf16.msra.mxu0 %v284
  %379 = vmatprep.subr.bf16.mxu0 0
  %380 = vmatpush1.bf16.msra.mxu0 %v283
  %381 = vmatprep.subr.bf16.mxu0 0
  %382 = vmatpush1.bf16.msra.mxu0 %v282
  %383 = vmatprep.subr.bf16.mxu0 0
  %384 = vmatpush1.bf16.msra.mxu0 %v281
  %385 = vmatprep.subr.bf16.mxu0 0
  %386 = vmatpush1.bf16.msra.mxu0 %v280
  %387 = vmatprep.subr.bf16.mxu0 0
  %388 = vmatpush1.bf16.msra.mxu0 %v279
  %389 = vmatprep.subr.bf16.mxu0 0
  %390 = vmatpush1.bf16.msra.mxu0 %v278
  %391 = vmatprep.subr.bf16.mxu0 0
  %392 = vmatpush2.bf16.msra.mxu0 %v293
  %393 = vmatprep.subr.bf16.mxu0 0
  %394 = vmatpush2.bf16.msra.mxu0 %v292
  %395 = vmatprep.subr.bf16.mxu0 0
  %396 = vmatpush2.bf16.msra.mxu0 %v291
  %397 = vmatprep.subr.bf16.mxu0 0
  %398 = vmatpush2.bf16.msra.mxu0 %v290
  %399 = vmatprep.subr.bf16.mxu0 0
  %400 = vmatpush2.bf16.msra.mxu0 %v289
  %401 = vmatprep.subr.bf16.mxu0 0
  %402 = vmatpush2.bf16.msra.mxu0 %v288
  %403 = vmatprep.subr.bf16.mxu0 0
  %404 = vmatpush2.bf16.msra.mxu0 %v287
  %405 = vmatprep.subr.bf16.mxu0 0
  %406 = vmatpush2.bf16.msra.mxu0 %v286
  %407 = vmatprep.mubr.bf16.mxu0 %v121
  %408 = vmatmul.mubr.bf16.gmra.mxu0 %v120
  %v409 = vpop.f32.mrf.mxu0
  %v410 = vadd.f32 %v361, %v409
  %v411 = vpop.f32.mrf.mxu0
  %v412 = vpop.f32.mrf.mxu0
  %v413 = vadd.f32 %v364, %v412
  %v414 = vpop.f32.mrf.mxu0
  %415 = vmatprep.mubr.bf16.mxu0 %v125
  %416 = vmatmul.mubr.bf16.gmra.mxu0 %v124
  %v417 = vpop.f32.mrf.mxu0
  %v418 = vadd.f32 %v369, %v417
  %v419 = vpop.f32.mrf.mxu0
  %v420 = vpop.f32.mrf.mxu0
  %v421 = vadd.f32 %v372, %v420
  %v422 = vpop.f32.mrf.mxu0
  %423 = vdwg.mxu0
  %v424 = vmax.f32 %v410, 0.0
  %v425 = vmax.f32 %v413, 0.0
  %v426 = vmax.f32 %v418, 0.0
  %v427 = vmax.f32 %v421, 0.0
  %v428 = vpack.c.bf16 %v425, %v424
  %v429 = vpack.c.bf16 %v427, %v426
  %v432 = vunpack.c.l.b16 %v428
  %v433 = vunpack.c.h.b16 %v428
  %v434 = vunpack.c.l.b16 %v429
  %v435 = vunpack.c.h.b16 %v429
  %v436 = vpack.c.b16 %v432, %v432
  %v437 = vpack.c.b16 %v433, %v433
  %v438 = vpack.c.b16 %v434, %v434
  %v439 = vpack.c.b16 %v435, %v435
  %444 = vst [vmem:[%s3] sm:$0xf] %v436
  %445 = vst [vmem:[%s3 + $0x4] sm:$0xf] %v437
  %446 = vst [vmem:[%s3 + $0x8] sm:$0xf] %v438
  %447 = vst [vmem:[%s3 + $0xc] sm:$0xf] %v439
  // Predicated region
  $region14: #{cnn_forward.5} parent=0 // pred_check
    _
  $region15: #{cnn_forward.5} parent=0 // pred_check_branch
    %449 = sbr.rel (0) target = $region17
  $region16: #{cnn_forward.5} parent=0 // pred_region
    _
  $region17: #{cnn_forward.5} parent=0 // pred_fallthru
    _
  // Predicated region
  $region18: #{cnn_forward.5} parent=0 // pred_check
    _
  $region19: #{cnn_forward.5} parent=0 // pred_check_branch
    %451 = sbr.rel (0) target = $region21
  $region20: #{cnn_forward.5} parent=0 // pred_region
    _
  $region21: #{cnn_forward.5} parent=0 // pred_fallthru
    _

// kernel: cnn_forward.6
$region0: #{cnn_forward.6}
  #allocation0 [shape = 'u32[]', space=smem, size = 0x4, offset = 0x4, fixed_abs, tag = 'smem constant byte address 0x4 - core index']
  #allocation1 [shape = 'u32[144,128]{1,0:T(1,128)}', space=vmem, size = 0x12000, scoped, tag = 'internal scratch']
  %s0 = inlined_call_operand.vmem [shape: bf16[16,576], index: 0, kind: input, shape index: {}]
  %s1 = inlined_call_operand.vmem [shape: bf16[576,128], index: 1, kind: input, shape index: {}]
  %s2 = inlined_call_operand.vmem [shape: f32[1,128], index: 2, kind: input, shape index: {}]
  %s3 = inlined_call_operand.vmem [shape: bf16[16,128], index: 3, kind: output, shape index: {}]
  %s4 = sld [smem:[#allocation0]]
  $region22: #{cnn_forward.6} parent=0
    _
  %s6 = ssub.s32 1, %s4
  %s7 = scalar_select 0, %s6, %s4
  // Predicated region
  $region2: #{cnn_forward.6} parent=0 // pred_check
    _
  $region3: #{cnn_forward.6} parent=0 // pred_check_branch
    %9 = sbr.rel (0) target = $region5
  $region4: #{cnn_forward.6} parent=0 // pred_region
    _
  $region5: #{cnn_forward.6} parent=0 // pred_fallthru
    _
  // Predicated region
  $region6: #{cnn_forward.6} parent=0 // pred_check
    _
  $region7: #{cnn_forward.6} parent=0 // pred_check_branch
    %11 = sbr.rel (0) target = $region9
  $region8: #{cnn_forward.6} parent=0 // pred_region
    _
  $region9: #{cnn_forward.6} parent=0 // pred_fallthru
    _
  // Predicated region
  $region10: #{cnn_forward.6} parent=0 // pred_check
    _
  $region11: #{cnn_forward.6} parent=0 // pred_check_branch
    %13 = sbr.rel (0) target = $region13
  $region12: #{cnn_forward.6} parent=0 // pred_region
    _
  $region13: #{cnn_forward.6} parent=0 // pred_fallthru
    _
  %v15 = vld [vmem:[%s0] sm:$0xff]
  %v16 = vld [vmem:[%s0 + $0x8] sm:$0xff]
  %v17 = vld [vmem:[%s0 + $0x10] sm:$0xf]
  %v18 = vld [vmem:[%s0 + $0x14] sm:$0xff]
  %v19 = vld [vmem:[%s0 + $0x1c] sm:$0xff]
  %v20 = vld [vmem:[%s0 + $0x24] sm:$0xf]
  %v21 = vld [vmem:[%s1] sm:$0xf]
  %v22 = vld [vmem:[%s1 + $0x4] sm:$0xf]
  %v23 = vld [vmem:[%s1 + $0x8] sm:$0xf]
  %v24 = vld [vmem:[%s1 + $0xc] sm:$0xf]
  %v25 = vld [vmem:[%s1 + $0x10] sm:$0xf]
  %v26 = vld [vmem:[%s1 + $0x14] sm:$0xf]
  %v27 = vld [vmem:[%s1 + $0x18] sm:$0xf]
  %v28 = vld [vmem:[%s1 + $0x1c] sm:$0xf]
  %v29 = vld [vmem:[%s1 + $0x20] sm:$0xf]
  %v30 = vld [vmem:[%s1 + $0x24] sm:$0xf]
  %v31 = vld [vmem:[%s1 + $0x28] sm:$0xf]
  %v32 = vld [vmem:[%s1 + $0x2c] sm:$0xf]
  %v33 = vld [vmem:[%s1 + $0x30] sm:$0xf]
  %v34 = vld [vmem:[%s1 + $0x34] sm:$0xf]
  %v35 = vld [vmem:[%s1 + $0x38] sm:$0xf]
  %v36 = vld [vmem:[%s1 + $0x3c] sm:$0xf]
  %v37 = vld [vmem:[%s1 + $0x40] sm:$0xf]
  %v38 = vld [vmem:[%s1 + $0x44] sm:$0xf]
  %v39 = vld [vmem:[%s1 + $0x48] sm:$0xf]
  %v40 = vld [vmem:[%s1 + $0x4c] sm:$0xf]
  %v41 = vld [vmem:[%s1 + $0x50] sm:$0xf]
  %v42 = vld [vmem:[%s1 + $0x54] sm:$0xf]
  %v43 = vld [vmem:[%s1 + $0x58] sm:$0xf]
  %v44 = vld [vmem:[%s1 + $0x5c] sm:$0xf]
  %v45 = vld [vmem:[%s1 + $0x60] sm:$0xf]
  %v46 = vld [vmem:[%s1 + $0x64] sm:$0xf]
  %v47 = vld [vmem:[%s1 + $0x68] sm:$0xf]
  %v48 = vld [vmem:[%s1 + $0x6c] sm:$0xf]
  %v49 = vld [vmem:[%s1 + $0x70] sm:$0xf]
  %v50 = vld [vmem:[%s1 + $0x74] sm:$0xf]
  %v51 = vld [vmem:[%s1 + $0x78] sm:$0xf]
  %v52 = vld [vmem:[%s1 + $0x7c] sm:$0xf]
  %v53 = vld [vmem:[%s1 + $0x80] sm:$0xf]
  %v54 = vld [vmem:[%s1 + $0x84] sm:$0xf]
  %v55 = vld [vmem:[%s1 + $0x88] sm:$0xf]
  %v56 = vld [vmem:[%s1 + $0x8c] sm:$0xf]
  %v57 = vld [vmem:[%s1 + $0x90] sm:$0xf]
  %v58 = vld [vmem:[%s1 + $0x94] sm:$0xf]
  %v59 = vld [vmem:[%s1 + $0x98] sm:$0xf]
  %v60 = vld [vmem:[%s1 + $0x9c] sm:$0xf]
  %v61 = vld [vmem:[%s1 + $0xa0] sm:$0xf]
  %v62 = vld [vmem:[%s1 + $0xa4] sm:$0xf]
  %v63 = vld [vmem:[%s1 + $0xa8] sm:$0xf]
  %v64 = vld [vmem:[%s1 + $0xac] sm:$0xf]
  %v65 = vld [vmem:[%s1 + $0xb0] sm:$0xf]
  %v66 = vld [vmem:[%s1 + $0xb4] sm:$0xf]
  %v67 = vld [vmem:[%s1 + $0xb8] sm:$0xf]
  %v68 = vld [vmem:[%s1 + $0xbc] sm:$0xf]
  %v69 = vld [vmem:[%s1 + $0xc0] sm:$0xf]
  %v70 = vld [vmem:[%s1 + $0xc4] sm:$0xf]
  %v71 = vld [vmem:[%s1 + $0xc8] sm:$0xf]
  %v72 = vld [vmem:[%s1 + $0xcc] sm:$0xf]
  %v73 = vld [vmem:[%s1 + $0xd0] sm:$0xf]
  %v74 = vld [vmem:[%s1 + $0xd4] sm:$0xf]
  %v75 = vld [vmem:[%s1 + $0xd8] sm:$0xf]
  %v76 = vld [vmem:[%s1 + $0xdc] sm:$0xf]
  %v77 = vld [vmem:[%s1 + $0xe0] sm:$0xf]
  %v78 = vld [vmem:[%s1 + $0xe4] sm:$0xf]
  %v79 = vld [vmem:[%s1 + $0xe8] sm:$0xf]
  %v80 = vld [vmem:[%s1 + $0xec] sm:$0xf]
  %v81 = vld [vmem:[%s1 + $0xf0] sm:$0xf]
  %v82 = vld [vmem:[%s1 + $0xf4] sm:$0xf]
  %v83 = vld [vmem:[%s1 + $0xf8] sm:$0xf]
  %v84 = vld [vmem:[%s1 + $0xfc] sm:$0xf]
  %v85 = vld [vmem:[%s1 + $0x100] sm:$0xf]
  %v86 = vld [vmem:[%s1 + $0x104] sm:$0xf]
  %v87 = vld [vmem:[%s1 + $0x108] sm:$0xf]
  %v88 = vld [vmem:[%s1 + $0x10c] sm:$0xf]
  %v89 = vld [vmem:[%s1 + $0x110] sm:$0xf]
  %v90 = vld [vmem:[%s1 + $0x114] sm:$0xf]
  %v91 = vld [vmem:[%s1 + $0x118] sm:$0xf]
  %v92 = vld [vmem:[%s1 + $0x11c] sm:$0xf]
  %v93 = vld [vmem:[%s2] sm:$0x1]
  %v95 = vlaneseq
  %v96 = vshrl.u32 %v95, 7
  %v97 = vsub.s32 0, %v96
  %v98 = vrot.slane %v93, %v97
  %v106 = vunpack.c.l.b16 %v15
  %v107 = vunpack.c.h.b16 %v15
  %v108 = vunpack.c.l.b16 %v16
  %v109 = vunpack.c.h.b16 %v16
  %v110 = vunpack.c.l.b16 %v17
  %v111 = vunpack.c.l.b16 %v18
  %v112 = vunpack.c.h.b16 %v18
  %v113 = vunpack.c.l.b16 %v19
  %v114 = vunpack.c.h.b16 %v19
  %v115 = vunpack.c.l.b16 %v20
  %v116 = vpack.c.b16 %v111, %v106
  %v117 = vpack.c.b16 %v112, %v107
  %v118 = vpack.c.b16 %v113, %v108
  %v119 = vpack.c.b16 %v114, %v109
  %v120 = vpack.c.b16 %v115, %v110
  %v197 = vunpack.c.l.b16 %v21
  %v198 = vunpack.c.l.b16 %v22
  %v199 = vunpack.c.l.b16 %v23
  %v200 = vunpack.c.l.b16 %v24
  %v201 = vunpack.c.l.b16 %v25
  %v202 = vunpack.c.l.b16 %v26
  %v203 = vunpack.c.l.b16 %v27
  %v204 = vunpack.c.l.b16 %v28
  %v205 = vunpack.c.l.b16 %v29
  %v206 = vunpack.c.l.b16 %v30
  %v207 = vunpack.c.l.b16 %v31
  %v208 = vunpack.c.l.b16 %v32
  %v209 = vunpack.c.l.b16 %v33
  %v210 = vunpack.c.l.b16 %v34
  %v211 = vunpack.c.l.b16 %v35
  %v212 = vunpack.c.l.b16 %v36
  %v213 = vunpack.c.l.b16 %v37
  %v214 = vunpack.c.l.b16 %v38
  %v215 = vunpack.c.l.b16 %v39
  %v216 = vunpack.c.l.b16 %v40
  %v217 = vunpack.c.l.b16 %v41
  %v218 = vunpack.c.l.b16 %v42
  %v219 = vunpack.c.l.b16 %v43
  %v220 = vunpack.c.l.b16 %v44
  %v221 = vunpack.c.l.b16 %v45
  %v222 = vunpack.c.l.b16 %v46
  %v223 = vunpack.c.l.b16 %v47
  %v224 = vunpack.c.l.b16 %v48
  %v225 = vunpack.c.l.b16 %v49
  %v226 = vunpack.c.l.b16 %v50
  %v227 = vunpack.c.l.b16 %v51
  %v228 = vunpack.c.l.b16 %v52
  %v229 = vunpack.c.l.b16 %v53
  %v230 = vunpack.c.l.b16 %v54
  %v231 = vunpack.c.l.b16 %v55
  %v232 = vunpack.c.l.b16 %v56
  %v233 = vunpack.c.l.b16 %v57
  %v234 = vunpack.c.l.b16 %v58
  %v235 = vunpack.c.l.b16 %v59
  %v236 = vunpack.c.l.b16 %v60
  %v237 = vunpack.c.l.b16 %v61
  %v238 = vunpack.c.l.b16 %v62
  %v239 = vunpack.c.l.b16 %v63
  %v240 = vunpack.c.l.b16 %v64
  %v241 = vunpack.c.l.b16 %v65
  %v242 = vunpack.c.l.b16 %v66
  %v243 = vunpack.c.l.b16 %v67
  %v244 = vunpack.c.l.b16 %v68
  %v245 = vunpack.c.l.b16 %v69
  %v246 = vunpack.c.l.b16 %v70
  %v247 = vunpack.c.l.b16 %v71
  %v248 = vunpack.c.l.b16 %v72
  %v249 = vunpack.c.l.b16 %v73
  %v250 = vunpack.c.l.b16 %v74
  %v251 = vunpack.c.l.b16 %v75
  %v252 = vunpack.c.l.b16 %v76
  %v253 = vunpack.c.l.b16 %v77
  %v254 = vunpack.c.l.b16 %v78
  %v255 = vunpack.c.l.b16 %v79
  %v256 = vunpack.c.l.b16 %v80
  %v257 = vunpack.c.l.b16 %v81
  %v258 = vunpack.c.l.b16 %v82
  %v259 = vunpack.c.l.b16 %v83
  %v260 = vunpack.c.l.b16 %v84
  %v261 = vunpack.c.l.b16 %v85
  %v262 = vunpack.c.l.b16 %v86
  %v263 = vunpack.c.l.b16 %v87
  %v264 = vunpack.c.l.b16 %v88
  %v265 = vunpack.c.l.b16 %v89
  %v266 = vunpack.c.l.b16 %v90
  %v267 = vunpack.c.l.b16 %v91
  %v268 = vunpack.c.l.b16 %v92
  %v269 = vpack.c.b16 %v198, %v197
  %v270 = vpack.c.b16 %v200, %v199
  %v271 = vpack.c.b16 %v202, %v201
  %v272 = vpack.c.b16 %v204, %v203
  %v273 = vpack.c.b16 %v206, %v205
  %v274 = vpack.c.b16 %v208, %v207
  %v275 = vpack.c.b16 %v210, %v209
  %v276 = vpack.c.b16 %v212, %v211
  %v277 = vpack.c.b16 %v214, %v213
  %v278 = vpack.c.b16 %v216, %v215
  %v279 = vpack.c.b16 %v218, %v217
  %v280 = vpack.c.b16 %v220, %v219
  %v281 = vpack.c.b16 %v222, %v221
  %v282 = vpack.c.b16 %v224, %v223
  %v283 = vpack.c.b16 %v226, %v225
  %v284 = vpack.c.b16 %v228, %v227
  %v285 = vpack.c.b16 %v230, %v229
  %v286 = vpack.c.b16 %v232, %v231
  %v287 = vpack.c.b16 %v234, %v233
  %v288 = vpack.c.b16 %v236, %v235
  %v289 = vpack.c.b16 %v238, %v237
  %v290 = vpack.c.b16 %v240, %v239
  %v291 = vpack.c.b16 %v242, %v241
  %v292 = vpack.c.b16 %v244, %v243
  %v293 = vpack.c.b16 %v246, %v245
  %v294 = vpack.c.b16 %v248, %v247
  %v295 = vpack.c.b16 %v250, %v249
  %v296 = vpack.c.b16 %v252, %v251
  %v297 = vpack.c.b16 %v254, %v253
  %v298 = vpack.c.b16 %v256, %v255
  %v299 = vpack.c.b16 %v258, %v257
  %v300 = vpack.c.b16 %v260, %v259
  %v301 = vpack.c.b16 %v262, %v261
  %v302 = vpack.c.b16 %v264, %v263
  %v303 = vpack.c.b16 %v266, %v265
  %v304 = vpack.c.b16 %v268, %v267
  %vm341 = vcmask 523264
  %v343 = vsel %vm341, %v120, 0
  %345 = vmatprep.subr.bf16.mxu0 0
  %346 = vmatpush1.bf16.msra.mxu0 %v276
  %347 = vmatprep.subr.bf16.mxu0 0
  %348 = vmatpush1.bf16.msra.mxu0 %v275
  %349 = vmatprep.subr.bf16.mxu0 0
  %350 = vmatpush1.bf16.msra.mxu0 %v274
  %351 = vmatprep.subr.bf16.mxu0 0
  %352 = vmatpush1.bf16.msra.mxu0 %v273
  %353 = vmatprep.subr.bf16.mxu0 0
  %354 = vmatpush1.bf16.msra.mxu0 %v272
  %355 = vmatprep.subr.bf16.mxu0 0
  %356 = vmatpush1.bf16.msra.mxu0 %v271
  %357 = vmatprep.subr.bf16.mxu0 0
  %358 = vmatpush1.bf16.msra.mxu0 %v270
  %359 = vmatprep.subr.bf16.mxu0 0
  %360 = vmatpush1.bf16.msra.mxu0 %v269
  %361 = vmatprep.subr.bf16.mxu0 0
  %362 = vmatpush2.bf16.msra.mxu0 %v284
  %363 = vmatprep.subr.bf16.mxu0 0
  %364 = vmatpush2.bf16.msra.mxu0 %v283
  %365 = vmatprep.subr.bf16.mxu0 0
  %366 = vmatpush2.bf16.msra.mxu0 %v282
  %367 = vmatprep.subr.bf16.mxu0 0
  %368 = vmatpush2.bf16.msra.mxu0 %v281
  %369 = vmatprep.subr.bf16.mxu0 0
  %370 = vmatpush2.bf16.msra.mxu0 %v280
  %371 = vmatprep.subr.bf16.mxu0 0
  %372 = vmatpush2.bf16.msra.mxu0 %v279
  %373 = vmatprep.subr.bf16.mxu0 0
  %374 = vmatpush2.bf16.msra.mxu0 %v278
  %375 = vmatprep.subr.bf16.mxu0 0
  %376 = vmatpush2.bf16.msra.mxu0 %v277
  %377 = vmatprep.mubr.bf16.mxu0 %v117
  %378 = vmatmul.mubr.bf16.gmra.mxu0 %v116
  %v379 = vpop.f32.mrf.mxu0
  %v380 = vadd.f32 %v98, %v379
  %v381 = vpop.f32.mrf.mxu0
  %v382 = vpop.f32.mrf.mxu0
  %v383 = vadd.f32 %v98, %v382
  %v384 = vpop.f32.mrf.mxu0
  %385 = vdwg.mxu0
  %386 = vmatprep.subr.bf16.mxu0 0
  %387 = vmatpush1.bf16.msra.mxu0 %v292
  %388 = vmatprep.subr.bf16.mxu0 0
  %389 = vmatpush1.bf16.msra.mxu0 %v291
  %390 = vmatprep.subr.bf16.mxu0 0
  %391 = vmatpush1.bf16.msra.mxu0 %v290
  %392 = vmatprep.subr.bf16.mxu0 0
  %393 = vmatpush1.bf16.msra.mxu0 %v289
  %394 = vmatprep.subr.bf16.mxu0 0
  %395 = vmatpush1.bf16.msra.mxu0 %v288
  %396 = vmatprep.subr.bf16.mxu0 0
  %397 = vmatpush1.bf16.msra.mxu0 %v287
  %398 = vmatprep.subr.bf16.mxu0 0
  %399 = vmatpush1.bf16.msra.mxu0 %v286
  %400 = vmatprep.subr.bf16.mxu0 0
  %401 = vmatpush1.bf16.msra.mxu0 %v285
  %402 = vmatprep.subr.bf16.mxu0 0
  %403 = vmatpush2.bf16.msra.mxu0 %v300
  %404 = vmatprep.subr.bf16.mxu0 0
  %405 = vmatpush2.bf16.msra.mxu0 %v299
  %406 = vmatprep.subr.bf16.mxu0 0
  %407 = vmatpush2.bf16.msra.mxu0 %v298
  %408 = vmatprep.subr.bf16.mxu0 0
  %409 = vmatpush2.bf16.msra.mxu0 %v297
  %410 = vmatprep.subr.bf16.mxu0 0
  %411 = vmatpush2.bf16.msra.mxu0 %v296
  %412 = vmatprep.subr.bf16.mxu0 0
  %413 = vmatpush2.bf16.msra.mxu0 %v295
  %414 = vmatprep.subr.bf16.mxu0 0
  %415 = vmatpush2.bf16.msra.mxu0 %v294
  %416 = vmatprep.subr.bf16.mxu0 0
  %417 = vmatpush2.bf16.msra.mxu0 %v293
  %418 = vmatprep.mubr.bf16.mxu0 %v119
  %419 = vmatmul.mubr.bf16.gmra.mxu0 %v118
  %v420 = vpop.f32.mrf.mxu0
  %v421 = vadd.f32 %v380, %v420
  %v422 = vpop.f32.mrf.mxu0
  %v423 = vpop.f32.mrf.mxu0
  %v424 = vadd.f32 %v383, %v423
  %v425 = vpop.f32.mrf.mxu0
  %426 = vdwg.mxu0
  %427 = vmatprep.subr.bf16.mxu0 0
  %428 = vmatpush1.bf16.msra.mxu0 0
  %429 = vmatprep.subr.bf16.mxu0 0
  %430 = vmatpush1.bf16.msra.mxu0 0
  %431 = vmatprep.subr.bf16.mxu0 0
  %432 = vmatpush1.bf16.msra.mxu0 0
  %433 = vmatprep.subr.bf16.mxu0 0
  %434 = vmatpush1.bf16.msra.mxu0 0
  %435 = vmatprep.subr.bf16.mxu0 0
  %436 = vmatpush1.bf16.msra.mxu0 %v304
  %437 = vmatprep.subr.bf16.mxu0 0
  %438 = vmatpush1.bf16.msra.mxu0 %v303
  %439 = vmatprep.subr.bf16.mxu0 0
  %440 = vmatpush1.bf16.msra.mxu0 %v302
  %441 = vmatprep.subr.bf16.mxu0 0
  %442 = vmatpush1.bf16.msra.mxu0 %v301
  %443 = vmatprep.subr.bf16.mxu0 0
  %444 = vmatpush2.bf16.msra.mxu0 0
  %445 = vmatprep.subr.bf16.mxu0 0
  %446 = vmatpush2.bf16.msra.mxu0 0
  %447 = vmatprep.subr.bf16.mxu0 0
  %448 = vmatpush2.bf16.msra.mxu0 0
  %449 = vmatprep.subr.bf16.mxu0 0
  %450 = vmatpush2.bf16.msra.mxu0 0
  %451 = vmatprep.subr.bf16.mxu0 0
  %452 = vmatpush2.bf16.msra.mxu0 0
  %453 = vmatprep.subr.bf16.mxu0 0
  %454 = vmatpush2.bf16.msra.mxu0 0
  %455 = vmatprep.subr.bf16.mxu0 0
  %456 = vmatpush2.bf16.msra.mxu0 0
  %457 = vmatprep.subr.bf16.mxu0 0
  %458 = vmatpush2.bf16.msra.mxu0 0
  %459 = vmatprep.mubr.bf16.mxu0 0
  %460 = vmatmul.mubr.bf16.gmra.mxu0 %v343
  %v461 = vpop.f32.mrf.mxu0
  %v462 = vadd.f32 %v421, %v461
  %v463 = vpop.f32.mrf.mxu0
  %v464 = vpop.f32.mrf.mxu0
  %v465 = vadd.f32 %v424, %v464
  %v466 = vpop.f32.mrf.mxu0
  %467 = vdwg.mxu0
  %v468 = vmax.f32 %v462, 0.0
  %v469 = vmax.f32 %v465, 0.0
  %v470 = vpack.c.bf16 %v469, %v468
  %v472 = vunpack.c.l.b16 %v470
  %v473 = vunpack.c.h.b16 %v470
  %v474 = vpack.c.b16 %v472, %v472
  %v475 = vpack.c.b16 %v473, %v473
  %478 = vst [vmem:[%s3] sm:$0xf] %v474
  %479 = vst [vmem:[%s3 + $0x4] sm:$0xf] %v475
  // Predicated region
  $region14: #{cnn_forward.6} parent=0 // pred_check
    _
  $region15: #{cnn_forward.6} parent=0 // pred_check_branch
    %481 = sbr.rel (0) target = $region17
  $region16: #{cnn_forward.6} parent=0 // pred_region
    _
  $region17: #{cnn_forward.6} parent=0 // pred_fallthru
    _
  // Predicated region
  $region18: #{cnn_forward.6} parent=0 // pred_check
    _
  $region19: #{cnn_forward.6} parent=0 // pred_check_branch
    %483 = sbr.rel (0) target = $region21
  $region20: #{cnn_forward.6} parent=0 // pred_region
    _
  $region21: #{cnn_forward.6} parent=0 // pred_fallthru
    _

// kernel: cnn_forward.7
$region0: #{cnn_forward.7}
  #allocation0 [shape = 'u32[]', space=smem, size = 0x4, offset = 0x4, fixed_abs, tag = 'smem constant byte address 0x4 - core index']
  #allocation1 [shape = 'u32[144,128]{1,0:T(1,128)}', space=vmem, size = 0x12000, scoped, tag = 'internal scratch']
  %s0 = inlined_call_operand.vmem [shape: bf16[16,64], index: 0, kind: input, shape index: {}]
  %s1 = inlined_call_operand.vmem [shape: bf16[64,512], index: 1, kind: input, shape index: {}]
  %s2 = inlined_call_operand.vmem [shape: f32[1,512], index: 2, kind: input, shape index: {}]
  %s3 = inlined_call_operand.vmem [shape: bf16[512,128], index: 3, kind: input, shape index: {}]
  %s4 = inlined_call_operand.vmem [shape: f32[1,128], index: 4, kind: input, shape index: {}]
  %s5 = inlined_call_operand.vmem [shape: f32[16,128], index: 5, kind: output, shape index: {}]
  %s6 = sld [smem:[#allocation0]]
  $region30: #{cnn_forward.7} parent=0
    _
  %s8 = ssub.s32 1, %s6
  %s9 = scalar_select 0, %s8, %s6
  // Predicated region
  $region2: #{cnn_forward.7} parent=0 // pred_check
    _
  $region3: #{cnn_forward.7} parent=0 // pred_check_branch
    %11 = sbr.rel (0) target = $region5
  $region4: #{cnn_forward.7} parent=0 // pred_region
    _
  $region5: #{cnn_forward.7} parent=0 // pred_fallthru
    _
  // Predicated region
  $region6: #{cnn_forward.7} parent=0 // pred_check
    _
  $region7: #{cnn_forward.7} parent=0 // pred_check_branch
    %13 = sbr.rel (0) target = $region9
  $region8: #{cnn_forward.7} parent=0 // pred_region
    _
  $region9: #{cnn_forward.7} parent=0 // pred_fallthru
    _
  // Predicated region
  $region10: #{cnn_forward.7} parent=0 // pred_check
    _
  $region11: #{cnn_forward.7} parent=0 // pred_check_branch
    %15 = sbr.rel (0) target = $region13
  $region12: #{cnn_forward.7} parent=0 // pred_region
    _
  $region13: #{cnn_forward.7} parent=0 // pred_fallthru
    _
  // Predicated region
  $region14: #{cnn_forward.7} parent=0 // pred_check
    _
  $region15: #{cnn_forward.7} parent=0 // pred_check_branch
    %17 = sbr.rel (0) target = $region17
  $region16: #{cnn_forward.7} parent=0 // pred_region
    _
  $region17: #{cnn_forward.7} parent=0 // pred_fallthru
    _
  // Predicated region
  $region18: #{cnn_forward.7} parent=0 // pred_check
    _
  $region19: #{cnn_forward.7} parent=0 // pred_check_branch
    %19 = sbr.rel (0) target = $region21
  $region20: #{cnn_forward.7} parent=0 // pred_region
    _
  $region21: #{cnn_forward.7} parent=0 // pred_fallthru
    _
  %v21 = vld [vmem:[%s0] sm:$0xf]
  %v22 = vld [vmem:[%s0 + $0x4] sm:$0xf]
  %v23 = vld [vmem:[%s1] sm:$0xff]
  %v24 = vld [vmem:[%s1 + $0x8] sm:$0xff]
  %v25 = vld [vmem:[%s1 + $0x10] sm:$0xff]
  %v26 = vld [vmem:[%s1 + $0x18] sm:$0xff]
  %v27 = vld [vmem:[%s1 + $0x20] sm:$0xff]
  %v28 = vld [vmem:[%s1 + $0x28] sm:$0xff]
  %v29 = vld [vmem:[%s1 + $0x30] sm:$0xff]
  %v30 = vld [vmem:[%s1 + $0x38] sm:$0xff]
  %v31 = vld [vmem:[%s1 + $0x40] sm:$0xff]
  %v32 = vld [vmem:[%s1 + $0x48] sm:$0xff]
  %v33 = vld [vmem:[%s1 + $0x50] sm:$0xff]
  %v34 = vld [vmem:[%s1 + $0x58] sm:$0xff]
  %v35 = vld [vmem:[%s1 + $0x60] sm:$0xff]
  %v36 = vld [vmem:[%s1 + $0x68] sm:$0xff]
  %v37 = vld [vmem:[%s1 + $0x70] sm:$0xff]
  %v38 = vld [vmem:[%s1 + $0x78] sm:$0xff]
  %v39 = vld [vmem:[%s2] sm:$0xf]
  %v41 = vlaneseq
  %v42 = vshrl.u32 %v41, 7
  %v43 = vsub.s32 0, %v42
  %v44 = vrot.slane %v39, %v43
  %v45 = vlaneseq
  %v46 = vshrl.u32 %v45, 7
  %v47 = vsub.s32 1, %v46
  %v48 = vrot.slane %v39, %v47
  %v49 = vlaneseq
  %v50 = vshrl.u32 %v49, 7
  %v51 = vsub.s32 2, %v50
  %v52 = vrot.slane %v39, %v51
  %v53 = vlaneseq
  %v54 = vshrl.u32 %v53, 7
  %v55 = vsub.s32 3, %v54
  %v56 = vrot.slane %v39, %v55
  %v63 = vunpack.c.l.b16 %v21
  %v64 = vunpack.c.l.b16 %v22
  %v65 = vpack.c.b16 %v64, %v63
  %v82 = vunpack.c.l.b16 %v23
  %v83 = vunpack.c.h.b16 %v23
  %v84 = vunpack.c.l.b16 %v24
  %v85 = vunpack.c.h.b16 %v24
  %v86 = vunpack.c.l.b16 %v25
  %v87 = vunpack.c.h.b16 %v25
  %v88 = vunpack.c.l.b16 %v26
  %v89 = vunpack.c.h.b16 %v26
  %v90 = vunpack.c.l.b16 %v27
  %v91 = vunpack.c.h.b16 %v27
  %v92 = vunpack.c.l.b16 %v28
  %v93 = vunpack.c.h.b16 %v28
  %v94 = vunpack.c.l.b16 %v29
  %v95 = vunpack.c.h.b16 %v29
  %v96 = vunpack.c.l.b16 %v30
  %v97 = vunpack.c.h.b16 %v30
  %v98 = vunpack.c.l.b16 %v31
  %v99 = vunpack.c.h.b16 %v31
  %v100 = vunpack.c.l.b16 %v32
  %v101 = vunpack.c.h.b16 %v32
  %v102 = vunpack.c.l.b16 %v33
  %v103 = vunpack.c.h.b16 %v33
  %v104 = vunpack.c.l.b16 %v34
  %v105 = vunpack.c.h.b16 %v34
  %v106 = vunpack.c.l.b16 %v35
  %v107 = vunpack.c.h.b16 %v35
  %v108 = vunpack.c.l.b16 %v36
  %v109 = vunpack.c.h.b16 %v36
  %v110 = vunpack.c.l.b16 %v37
  %v111 = vunpack.c.h.b16 %v37
  %v112 = vunpack.c.l.b16 %v38
  %v113 = vunpack.c.h.b16 %v38
  %v114 = vpack.c.b16 %v86, %v82
  %v115 = vpack.c.b16 %v87, %v83
  %v116 = vpack.c.b16 %v88, %v84
  %v117 = vpack.c.b16 %v89, %v85
  %v118 = vpack.c.b16 %v94, %v90
  %v119 = vpack.c.b16 %v95, %v91
  %v120 = vpack.c.b16 %v96, %v92
  %v121 = vpack.c.b16 %v97, %v93
  %v122 = vpack.c.b16 %v102, %v98
  %v123 = vpack.c.b16 %v103, %v99
  %v124 = vpack.c.b16 %v104, %v100
  %v125 = vpack.c.b16 %v105, %v101
  %v126 = vpack.c.b16 %v110, %v106
  %v127 = vpack.c.b16 %v111, %v107
  %v128 = vpack.c.b16 %v112, %v108
  %v129 = vpack.c.b16 %v113, %v109
  %vm146 = vcmask 523264
  %v148 = vsel %vm146, %v65, 0
  %150 = vmatprep.subr.bf16.mxu0 0
  %151 = vmatpush1.bf16.msra.mxu0 0
  %152 = vmatprep.subr.bf16.mxu0 0
  %153 = vmatpush1.bf16.msra.mxu0 0
  %154 = vmatprep.subr.bf16.mxu0 0
  %155 = vmatpush1.bf16.msra.mxu0 0
  %156 = vmatprep.subr.bf16.mxu0 0
  %157 = vmatpush1.bf16.msra.mxu0 0
  %158 = vmatprep.subr.bf16.mxu0 %v127
  %159 = vmatpush1.bf16.msra.mxu0 %v126
  %160 = vmatprep.subr.bf16.mxu0 %v123
  %161 = vmatpush1.bf16.msra.mxu0 %v122
  %162 = vmatprep.subr.bf16.mxu0 %v119
  %163 = vmatpush1.bf16.msra.mxu0 %v118
  %164 = vmatprep.subr.bf16.mxu0 %v115
  %165 = vmatpush1.bf16.msra.mxu0 %v114
  %166 = vmatprep.subr.bf16.mxu0 0
  %167 = vmatpush2.bf16.msra.mxu0 0
  %168 = vmatprep.subr.bf16.mxu0 0
  %169 = vmatpush2.bf16.msra.mxu0 0
  %170 = vmatprep.subr.bf16.mxu0 0
  %171 = vmatpush2.bf16.msra.mxu0 0
  %172 = vmatprep.subr.bf16.mxu0 0
  %173 = vmatpush2.bf16.msra.mxu0 0
  %174 = vmatprep.subr.bf16.mxu0 0
  %175 = vmatpush2.bf16.msra.mxu0 0
  %176 = vmatprep.subr.bf16.mxu0 0
  %177 = vmatpush2.bf16.msra.mxu0 0
  %178 = vmatprep.subr.bf16.mxu0 0
  %179 = vmatpush2.bf16.msra.mxu0 0
  %180 = vmatprep.subr.bf16.mxu0 0
  %181 = vmatpush2.bf16.msra.mxu0 0
  %182 = vmatprep.mubr.bf16.mxu0 0
  %183 = vmatmul.mubr.bf16.gmra.mxu0 %v148
  %v184 = vpop.f32.mrf.mxu0
  %v185 = vadd.f32 %v44, %v184
  %v186 = vpop.f32.mrf.mxu0
  %v187 = vadd.f32 %v48, %v186
  %v188 = vpop.f32.mrf.mxu0
  %v189 = vadd.f32 %v44, %v188
  %v190 = vpop.f32.mrf.mxu0
  %v191 = vadd.f32 %v48, %v190
  %192 = vdwg.mxu0
  %193 = vmatprep.subr.bf16.mxu0 0
  %194 = vmatpush1.bf16.msra.mxu0 0
  %195 = vmatprep.subr.bf16.mxu0 0
  %196 = vmatpush1.bf16.msra.mxu0 0
  %197 = vmatprep.subr.bf16.mxu0 0
  %198 = vmatpush1.bf16.msra.mxu0 0
  %199 = vmatprep.subr.bf16.mxu0 0
  %200 = vmatpush1.bf16.msra.mxu0 0
  %201 = vmatprep.subr.bf16.mxu0 %v129
  %202 = vmatpush1.bf16.msra.mxu0 %v128
  %203 = vmatprep.subr.bf16.mxu0 %v125
  %204 = vmatpush1.bf16.msra.mxu0 %v124
  %205 = vmatprep.subr.bf16.mxu0 %v121
  %206 = vmatpush1.bf16.msra.mxu0 %v120
  %207 = vmatprep.subr.bf16.mxu0 %v117
  %208 = vmatpush1.bf16.msra.mxu0 %v116
  %209 = vmatprep.subr.bf16.mxu0 0
  %210 = vmatpush2.bf16.msra.mxu0 0
  %211 = vmatprep.subr.bf16.mxu0 0
  %212 = vmatpush2.bf16.msra.mxu0 0
  %213 = vmatprep.subr.bf16.mxu0 0
  %214 = vmatpush2.bf16.msra.mxu0 0
  %215 = vmatprep.subr.bf16.mxu0 0
  %216 = vmatpush2.bf16.msra.mxu0 0
  %217 = vmatprep.subr.bf16.mxu0 0
  %218 = vmatpush2.bf16.msra.mxu0 0
  %219 = vmatprep.subr.bf16.mxu0 0
  %220 = vmatpush2.bf16.msra.mxu0 0
  %221 = vmatprep.subr.bf16.mxu0 0
  %222 = vmatpush2.bf16.msra.mxu0 0
  %223 = vmatprep.subr.bf16.mxu0 0
  %224 = vmatpush2.bf16.msra.mxu0 0
  %225 = vmatprep.mubr.bf16.mxu0 0
  %226 = vmatmul.mubr.bf16.gmra.mxu0 %v148
  %v227 = vpop.f32.mrf.mxu0
  %v228 = vadd.f32 %v52, %v227
  %v229 = vpop.f32.mrf.mxu0
  %v230 = vadd.f32 %v56, %v229
  %v231 = vpop.f32.mrf.mxu0
  %v232 = vadd.f32 %v52, %v231
  %v233 = vpop.f32.mrf.mxu0
  %v234 = vadd.f32 %v56, %v233
  %235 = vdwg.mxu0
  %v236 = vmax.f32 %v185, 0.0
  %v237 = vmax.f32 %v187, 0.0
  %v238 = vmax.f32 %v228, 0.0
  %v239 = vmax.f32 %v230, 0.0
  %v240 = vmax.f32 %v189, 0.0
  %v241 = vmax.f32 %v191, 0.0
  %v242 = vmax.f32 %v232, 0.0
  %v243 = vmax.f32 %v234, 0.0
  %v244 = vpack.c.bf16 %v240, %v236
  %v245 = vpack.c.bf16 %v241, %v237
  %v246 = vpack.c.bf16 %v242, %v238
  %v247 = vpack.c.bf16 %v243, %v239
  %v248 = vld [vmem:[%s3] sm:$0xf]
  %v249 = vld [vmem:[%s3 + $0x4] sm:$0xf]
  %v250 = vld [vmem:[%s3 + $0x8] sm:$0xf]
  %v251 = vld [vmem:[%s3 + $0xc] sm:$0xf]
  %v252 = vld [vmem:[%s3 + $0x10] sm:$0xf]
  %v253 = vld [vmem:[%s3 + $0x14] sm:$0xf]
  %v254 = vld [vmem:[%s3 + $0x18] sm:$0xf]
  %v255 = vld [vmem:[%s3 + $0x1c] sm:$0xf]
  %v256 = vld [vmem:[%s3 + $0x20] sm:$0xf]
  %v257 = vld [vmem:[%s3 + $0x24] sm:$0xf]
  %v258 = vld [vmem:[%s3 + $0x28] sm:$0xf]
  %v259 = vld [vmem:[%s3 + $0x2c] sm:$0xf]
  %v260 = vld [vmem:[%s3 + $0x30] sm:$0xf]
  %v261 = vld [vmem:[%s3 + $0x34] sm:$0xf]
  %v262 = vld [vmem:[%s3 + $0x38] sm:$0xf]
  %v263 = vld [vmem:[%s3 + $0x3c] sm:$0xf]
  %v264 = vld [vmem:[%s3 + $0x40] sm:$0xf]
  %v265 = vld [vmem:[%s3 + $0x44] sm:$0xf]
  %v266 = vld [vmem:[%s3 + $0x48] sm:$0xf]
  %v267 = vld [vmem:[%s3 + $0x4c] sm:$0xf]
  %v268 = vld [vmem:[%s3 + $0x50] sm:$0xf]
  %v269 = vld [vmem:[%s3 + $0x54] sm:$0xf]
  %v270 = vld [vmem:[%s3 + $0x58] sm:$0xf]
  %v271 = vld [vmem:[%s3 + $0x5c] sm:$0xf]
  %v272 = vld [vmem:[%s3 + $0x60] sm:$0xf]
  %v273 = vld [vmem:[%s3 + $0x64] sm:$0xf]
  %v274 = vld [vmem:[%s3 + $0x68] sm:$0xf]
  %v275 = vld [vmem:[%s3 + $0x6c] sm:$0xf]
  %v276 = vld [vmem:[%s3 + $0x70] sm:$0xf]
  %v277 = vld [vmem:[%s3 + $0x74] sm:$0xf]
  %v278 = vld [vmem:[%s3 + $0x78] sm:$0xf]
  %v279 = vld [vmem:[%s3 + $0x7c] sm:$0xf]
  %v280 = vld [vmem:[%s3 + $0x80] sm:$0xf]
  %v281 = vld [vmem:[%s3 + $0x84] sm:$0xf]
  %v282 = vld [vmem:[%s3 + $0x88] sm:$0xf]
  %v283 = vld [vmem:[%s3 + $0x8c] sm:$0xf]
  %v284 = vld [vmem:[%s3 + $0x90] sm:$0xf]
  %v285 = vld [vmem:[%s3 + $0x94] sm:$0xf]
  %v286 = vld [vmem:[%s3 + $0x98] sm:$0xf]
  %v287 = vld [vmem:[%s3 + $0x9c] sm:$0xf]
  %v288 = vld [vmem:[%s3 + $0xa0] sm:$0xf]
  %v289 = vld [vmem:[%s3 + $0xa4] sm:$0xf]
  %v290 = vld [vmem:[%s3 + $0xa8] sm:$0xf]
  %v291 = vld [vmem:[%s3 + $0xac] sm:$0xf]
  %v292 = vld [vmem:[%s3 + $0xb0] sm:$0xf]
  %v293 = vld [vmem:[%s3 + $0xb4] sm:$0xf]
  %v294 = vld [vmem:[%s3 + $0xb8] sm:$0xf]
  %v295 = vld [vmem:[%s3 + $0xbc] sm:$0xf]
  %v296 = vld [vmem:[%s3 + $0xc0] sm:$0xf]
  %v297 = vld [vmem:[%s3 + $0xc4] sm:$0xf]
  %v298 = vld [vmem:[%s3 + $0xc8] sm:$0xf]
  %v299 = vld [vmem:[%s3 + $0xcc] sm:$0xf]
  %v300 = vld [vmem:[%s3 + $0xd0] sm:$0xf]
  %v301 = vld [vmem:[%s3 + $0xd4] sm:$0xf]
  %v302 = vld [vmem:[%s3 + $0xd8] sm:$0xf]
  %v303 = vld [vmem:[%s3 + $0xdc] sm:$0xf]
  %v304 = vld [vmem:[%s3 + $0xe0] sm:$0xf]
  %v305 = vld [vmem:[%s3 + $0xe4] sm:$0xf]
  %v306 = vld [vmem:[%s3 + $0xe8] sm:$0xf]
  %v307 = vld [vmem:[%s3 + $0xec] sm:$0xf]
  %v308 = vld [vmem:[%s3 + $0xf0] sm:$0xf]
  %v309 = vld [vmem:[%s3 + $0xf4] sm:$0xf]
  %v310 = vld [vmem:[%s3 + $0xf8] sm:$0xf]
  %v311 = vld [vmem:[%s3 + $0xfc] sm:$0xf]
  %v312 = vld [vmem:[%s4] sm:$0x1]
  %v314 = vlaneseq
  %v315 = vshrl.u32 %v314, 7
  %v316 = vsub.s32 0, %v315
  %v317 = vrot.slane %v312, %v316
  %v383 = vunpack.c.l.b16 %v248
  %v384 = vunpack.c.l.b16 %v249
  %v385 = vunpack.c.l.b16 %v250
  %v386 = vunpack.c.l.b16 %v251
  %v387 = vunpack.c.l.b16 %v252
  %v388 = vunpack.c.l.b16 %v253
  %v389 = vunpack.c.l.b16 %v254
  %v390 = vunpack.c.l.b16 %v255
  %v391 = vunpack.c.l.b16 %v256
  %v392 = vunpack.c.l.b16 %v257
  %v393 = vunpack.c.l.b16 %v258
  %v394 = vunpack.c.l.b16 %v259
  %v395 = vunpack.c.l.b16 %v260
  %v396 = vunpack.c.l.b16 %v261
  %v397 = vunpack.c.l.b16 %v262
  %v398 = vunpack.c.l.b16 %v263
  %v399 = vunpack.c.l.b16 %v264
  %v400 = vunpack.c.l.b16 %v265
  %v401 = vunpack.c.l.b16 %v266
  %v402 = vunpack.c.l.b16 %v267
  %v403 = vunpack.c.l.b16 %v268
  %v404 = vunpack.c.l.b16 %v269
  %v405 = vunpack.c.l.b16 %v270
  %v406 = vunpack.c.l.b16 %v271
  %v407 = vunpack.c.l.b16 %v272
  %v408 = vunpack.c.l.b16 %v273
  %v409 = vunpack.c.l.b16 %v274
  %v410 = vunpack.c.l.b16 %v275
  %v411 = vunpack.c.l.b16 %v276
  %v412 = vunpack.c.l.b16 %v277
  %v413 = vunpack.c.l.b16 %v278
  %v414 = vunpack.c.l.b16 %v279
  %v415 = vunpack.c.l.b16 %v280
  %v416 = vunpack.c.l.b16 %v281
  %v417 = vunpack.c.l.b16 %v282
  %v418 = vunpack.c.l.b16 %v283
  %v419 = vunpack.c.l.b16 %v284
  %v420 = vunpack.c.l.b16 %v285
  %v421 = vunpack.c.l.b16 %v286
  %v422 = vunpack.c.l.b16 %v287
  %v423 = vunpack.c.l.b16 %v288
  %v424 = vunpack.c.l.b16 %v289
  %v425 = vunpack.c.l.b16 %v290
  %v426 = vunpack.c.l.b16 %v291
  %v427 = vunpack.c.l.b16 %v292
  %v428 = vunpack.c.l.b16 %v293
  %v429 = vunpack.c.l.b16 %v294
  %v430 = vunpack.c.l.b16 %v295
  %v431 = vunpack.c.l.b16 %v296
  %v432 = vunpack.c.l.b16 %v297
  %v433 = vunpack.c.l.b16 %v298
  %v434 = vunpack.c.l.b16 %v299
  %v435 = vunpack.c.l.b16 %v300
  %v436 = vunpack.c.l.b16 %v301
  %v437 = vunpack.c.l.b16 %v302
  %v438 = vunpack.c.l.b16 %v303
  %v439 = vunpack.c.l.b16 %v304
  %v440 = vunpack.c.l.b16 %v305
  %v441 = vunpack.c.l.b16 %v306
  %v442 = vunpack.c.l.b16 %v307
  %v443 = vunpack.c.l.b16 %v308
  %v444 = vunpack.c.l.b16 %v309
  %v445 = vunpack.c.l.b16 %v310
  %v446 = vunpack.c.l.b16 %v311
  %v447 = vpack.c.b16 %v384, %v383
  %v448 = vpack.c.b16 %v386, %v385
  %v449 = vpack.c.b16 %v388, %v387
  %v450 = vpack.c.b16 %v390, %v389
  %v451 = vpack.c.b16 %v392, %v391
  %v452 = vpack.c.b16 %v394, %v393
  %v453 = vpack.c.b16 %v396, %v395
  %v454 = vpack.c.b16 %v398, %v397
  %v455 = vpack.c.b16 %v400, %v399
  %v456 = vpack.c.b16 %v402, %v401
  %v457 = vpack.c.b16 %v404, %v403
  %v458 = vpack.c.b16 %v406, %v405
  %v459 = vpack.c.b16 %v408, %v407
  %v460 = vpack.c.b16 %v410, %v409
  %v461 = vpack.c.b16 %v412, %v411
  %v462 = vpack.c.b16 %v414, %v413
  %v463 = vpack.c.b16 %v416, %v415
  %v464 = vpack.c.b16 %v418, %v417
  %v465 = vpack.c.b16 %v420, %v419
  %v466 = vpack.c.b16 %v422, %v421
  %v467 = vpack.c.b16 %v424, %v423
  %v468 = vpack.c.b16 %v426, %v425
  %v469 = vpack.c.b16 %v428, %v427
  %v470 = vpack.c.b16 %v430, %v429
  %v471 = vpack.c.b16 %v432, %v431
  %v472 = vpack.c.b16 %v434, %v433
  %v473 = vpack.c.b16 %v436, %v435
  %v474 = vpack.c.b16 %v438, %v437
  %v475 = vpack.c.b16 %v440, %v439
  %v476 = vpack.c.b16 %v442, %v441
  %v477 = vpack.c.b16 %v444, %v443
  %v478 = vpack.c.b16 %v446, %v445
  %511 = vmatprep.subr.bf16.mxu0 0
  %512 = vmatpush1.bf16.msra.mxu0 %v454
  %513 = vmatprep.subr.bf16.mxu0 0
  %514 = vmatpush1.bf16.msra.mxu0 %v453
  %515 = vmatprep.subr.bf16.mxu0 0
  %516 = vmatpush1.bf16.msra.mxu0 %v452
  %517 = vmatprep.subr.bf16.mxu0 0
  %518 = vmatpush1.bf16.msra.mxu0 %v451
  %519 = vmatprep.subr.bf16.mxu0 0
  %520 = vmatpush1.bf16.msra.mxu0 %v450
  %521 = vmatprep.subr.bf16.mxu0 0
  %522 = vmatpush1.bf16.msra.mxu0 %v449
  %523 = vmatprep.subr.bf16.mxu0 0
  %524 = vmatpush1.bf16.msra.mxu0 %v448
  %525 = vmatprep.subr.bf16.mxu0 0
  %526 = vmatpush1.bf16.msra.mxu0 %v447
  %527 = vmatprep.subr.bf16.mxu0 0
  %528 = vmatpush2.bf16.msra.mxu0 %v462
  %529 = vmatprep.subr.bf16.mxu0 0
  %530 = vmatpush2.bf16.msra.mxu0 %v461
  %531 = vmatprep.subr.bf16.mxu0 0
  %532 = vmatpush2.bf16.msra.mxu0 %v460
  %533 = vmatprep.subr.bf16.mxu0 0
  %534 = vmatpush2.bf16.msra.mxu0 %v459
  %535 = vmatprep.subr.bf16.mxu0 0
  %536 = vmatpush2.bf16.msra.mxu0 %v458
  %537 = vmatprep.subr.bf16.mxu0 0
  %538 = vmatpush2.bf16.msra.mxu0 %v457
  %539 = vmatprep.subr.bf16.mxu0 0
  %540 = vmatpush2.bf16.msra.mxu0 %v456
  %541 = vmatprep.subr.bf16.mxu0 0
  %542 = vmatpush2.bf16.msra.mxu0 %v455
  %543 = vmatprep.mubr.bf16.mxu0 %v245
  %544 = vmatmul.mubr.bf16.gmra.mxu0 %v244
  %v545 = vpop.f32.mrf.mxu0
  %v546 = vadd.f32 %v317, %v545
  %v547 = vpop.f32.mrf.mxu0
  %v548 = vpop.f32.mrf.mxu0
  %v549 = vadd.f32 %v317, %v548
  %v550 = vpop.f32.mrf.mxu0
  %551 = vdwg.mxu0
  %552 = vmatprep.subr.bf16.mxu0 0
  %553 = vmatpush1.bf16.msra.mxu0 %v470
  %554 = vmatprep.subr.bf16.mxu0 0
  %555 = vmatpush1.bf16.msra.mxu0 %v469
  %556 = vmatprep.subr.bf16.mxu0 0
  %557 = vmatpush1.bf16.msra.mxu0 %v468
  %558 = vmatprep.subr.bf16.mxu0 0
  %559 = vmatpush1.bf16.msra.mxu0 %v467
  %560 = vmatprep.subr.bf16.mxu0 0
  %561 = vmatpush1.bf16.msra.mxu0 %v466
  %562 = vmatprep.subr.bf16.mxu0 0
  %563 = vmatpush1.bf16.msra.mxu0 %v465
  %564 = vmatprep.subr.bf16.mxu0 0
  %565 = vmatpush1.bf16.msra.mxu0 %v464
  %566 = vmatprep.subr.bf16.mxu0 0
  %567 = vmatpush1.bf16.msra.mxu0 %v463
  %568 = vmatprep.subr.bf16.mxu0 0
  %569 = vmatpush2.bf16.msra.mxu0 %v478
  %570 = vmatprep.subr.bf16.mxu0 0
  %571 = vmatpush2.bf16.msra.mxu0 %v477
  %572 = vmatprep.subr.bf16.mxu0 0
  %573 = vmatpush2.bf16.msra.mxu0 %v476
  %574 = vmatprep.subr.bf16.mxu0 0
  %575 = vmatpush2.bf16.msra.mxu0 %v475
  %576 = vmatprep.subr.bf16.mxu0 0
  %577 = vmatpush2.bf16.msra.mxu0 %v474
  %578 = vmatprep.subr.bf16.mxu0 0
  %579 = vmatpush2.bf16.msra.mxu0 %v473
  %580 = vmatprep.subr.bf16.mxu0 0
  %581 = vmatpush2.bf16.msra.mxu0 %v472
  %582 = vmatprep.subr.bf16.mxu0 0
  %583 = vmatpush2.bf16.msra.mxu0 %v471
  %584 = vmatprep.mubr.bf16.mxu0 %v247
  %585 = vmatmul.mubr.bf16.gmra.mxu0 %v246
  %v586 = vpop.f32.mrf.mxu0
  %v587 = vadd.f32 %v546, %v586
  %v588 = vpop.f32.mrf.mxu0
  %v589 = vpop.f32.mrf.mxu0
  %v590 = vadd.f32 %v549, %v589
  %v591 = vpop.f32.mrf.mxu0
  %592 = vdwg.mxu0
  %v593 = vlaneseq
  %v594 = vand.u32 %v593, 127
  %vm595 = vcmp.lt.s32.totalorder %v594, 6
  %v596 = vsel %vm595, 1, 0
  %v597 = vcvt.s32.f32 %v596
  %vm598 = vcmp.eq.s32.totalorder %v594, 6
  %v599 = vsel %vm598, 1, 0
  %v600 = vcvt.s32.f32 %v599
  %v601 = vmul.f32 %v587, %v597
  %v602 = vmul.f32 %v590, %v597
  %603 = vadd.xlane.f32.xlu0 %v601
  %v604 = vpop.xlane.xlu0 %603
  %605 = vadd.xlane.f32.xlu0 %v602
  %v606 = vpop.xlane.xlu0 %605
  %v607 = vmul.f32 %v604, 0.16666667
  %v608 = vmul.f32 %v606, 0.16666667
  %v609 = vmul.f32 %v587, %v600
  %v610 = vmul.f32 %v590, %v600
  %611 = vadd.xlane.f32.xlu0 %v609
  %v612 = vpop.xlane.xlu0 %611
  %613 = vadd.xlane.f32.xlu0 %v610
  %v614 = vpop.xlane.xlu0 %613
  %v615 = vadd.f32 %v612, %v587
  %v616 = vadd.f32 %v614, %v590
  %v617 = vsub.f32 %v615, %v607
  %v618 = vsub.f32 %v616, %v608
  %619 = vst [vmem:[%s5] sm:$0xff] %v617
  %620 = vst [vmem:[%s5 + $0x8] sm:$0xff] %v618
  // Predicated region
  $region22: #{cnn_forward.7} parent=0 // pred_check
    _
  $region23: #{cnn_forward.7} parent=0 // pred_check_branch
    %622 = sbr.rel (0) target = $region25
  $region24: #{cnn_forward.7} parent=0 // pred_region
    _
  $region25: #{cnn_forward.7} parent=0 // pred_fallthru
    _
  // Predicated region
  $region26: #{cnn_forward.7} parent=0 // pred_check
    _
  $region27: #{cnn_forward.7} parent=0 // pred_check_branch
    %624 = sbr.rel (0) target = $region29
  $region28: #{cnn_forward.7} parent=0 // pred_region
    _
  $region29: #{cnn_forward.7} parent=0 // pred_fallthru
    _

</llo_original>
